<compile_context>
chip_gen: v7x
topology: tpu7x:2x2x1
jax: 0.10.0
libtpu: 0.0.40
codegen_flags: <defaults>
</compile_context>

<pallas_src>
import functools

import jax
import jax.numpy as jnp
from jax import lax
from jax.experimental import pallas as pl
from jax.experimental.pallas import tpu as pltpu


INPUT_SIZE = 2
HIDDEN = 100
HIDDEN_PAD = 128          # lane-aligned hidden size used inside the kernel
OUT = 2
HEAD_PAD = 128            # lane-dense head output width (sliced to OUT outside)


def lstm_kernel(x_ref, w_ih_ref, w_hh_hbm, b_ref, w_head_ref, b_head_ref,
                pred_ref, p_scr, hs_scr, w_hh_vmem, copy_sem,
                *, seq_len, batch, hidden_pad):
    B = batch
    HP = hidden_pad

    # (0) Kick off the W_hh HBM->VMEM DMA.  It overlaps the input projection
    #     and the peeled t=0 step, neither of which needs W_hh.
    w_hh_copy = pltpu.make_async_copy(w_hh_hbm, w_hh_vmem, copy_sem)
    w_hh_copy.start()

    # (1) Input projection for every timestep at once (hoisted out of the
    #     recurrence):  (S*B, I) @ (I, 4*HP) + bias  ->  (S*B, 4*HP).
    p_scr[...] = (
        jnp.dot(x_ref[...], w_ih_ref[...], preferred_element_type=jnp.float32)
        + b_ref[...])

    # Fused gate layout is [i, f, o, g]: the three sigmoid gates are one
    # contiguous 3*HP slice, tanh gate is the last HP lanes.
    def activate(gates):
        sig = jax.nn.sigmoid(gates[:, :3 * HP])
        i_g = sig[:, 0 * HP:1 * HP]
        f_g = sig[:, 1 * HP:2 * HP]
        o_g = sig[:, 2 * HP:3 * HP]
        g_g = jnp.tanh(gates[:, 3 * HP:4 * HP])
        return i_g, f_g, o_g, g_g

    # (2a) Peeled t = 0: h_{-1} = c_{-1} = 0, so gates_0 is just the input
    #      projection; no recurrent matmul needed.
    gates0 = p_scr[0:B, :]
    i0, f0, o0, g0 = activate(gates0)
    c_prev = i0 * g0
    h_prev = o0 * jnp.tanh(c_prev)
    hs_scr[0:B, :] = h_prev

    # W_hh must be resident in VMEM before the first recurrent matmul.
    w_hh_copy.wait()

    # (2b) Recurrence t = 1 .. S-1: one fused (B, HP) x (HP, 4*HP) matmul per
    #      timestep.  W_hh is (re)loaded from VMEM each step so 64 weight
    #      vregs are not pinned across the unrolled loop.
    row_align = 8 if (B % 8 == 0) else B

    def step(t, carry):
        h_p, c_p = carry
        row = pl.multiple_of(t * B, row_align)        # sublane-aligned offset
        p_t = p_scr[pl.ds(row, B), :]                 # (B, 4*HP)
        gates = p_t + jnp.dot(h_p, w_hh_vmem[...],
                              preferred_element_type=jnp.float32)
        i_g, f_g, o_g, g_g = activate(gates)
        c_new = f_g * c_p + i_g * g_g
        h_new = o_g * jnp.tanh(c_new)
        hs_scr[pl.ds(row, B), :] = h_new              # lane-dense hidden slab
        return h_new, c_new

    lax.fori_loop(1, seq_len, step, (h_prev, c_prev), unroll=True)

    # (3) Lane-dense Linear head amortized over all timesteps:
    #     (S*B, HP) @ (HP, HEAD_PAD) + bias; caller slices [:, :OUT].
    pred = (jnp.dot(hs_scr[...], w_head_ref[...],
                    preferred_element_type=jnp.float32)
            + b_head_ref[...])
    pred_ref[...] = pred.astype(pred_ref.dtype)


def lstm_forward(x, w_ih, w_hh, b, w_head, b_head):
    """x: (S, B, INPUT_SIZE) f32.  Returns (S*B, OUT) f32."""
    S, B, I = x.shape
    H = HIDDEN
    HP = HIDDEN_PAD

    # Fused + lane-padded weight layouts.  Fused gate slot order is
    # [i, f, o, g] (params are stored in PyTorch order [i, f, g, o]).  Padded
    # lanes / rows are zero, keeping the padded part of h and c exactly 0.
    GATE_ORDER = (0, 1, 3, 2)   # params (i, f, g, o) -> fused slots (i, f, o, g)
    w_ih_f = jnp.zeros((I, 4 * HP), jnp.float32)
    w_hh_f = jnp.zeros((HP, 4 * HP), jnp.float32)
    b_f = jnp.zeros((1, 4 * HP), jnp.float32)
    for slot, k in enumerate(GATE_ORDER):
        w_ih_f = w_ih_f.at[:, slot * HP:slot * HP + H].set(w_ih[k])
        w_hh_f = w_hh_f.at[:H, slot * HP:slot * HP + H].set(w_hh[k])
        b_f = b_f.at[:, slot * HP:slot * HP + H].set(b[k])
    w_head_p = jnp.zeros((HP, HEAD_PAD), jnp.float32).at[:H, :OUT].set(w_head)
    b_head_p = jnp.zeros((1, HEAD_PAD), jnp.float32).at[:, :OUT].set(b_head)

    x2d = x.reshape(S * B, I)

    kernel = functools.partial(lstm_kernel, seq_len=S, batch=B, hidden_pad=HP)

    pred_pad = pl.pallas_call(
        kernel,
        out_shape=jax.ShapeDtypeStruct((S * B, HEAD_PAD), jnp.float32),
        grid_spec=pltpu.PrefetchScalarGridSpec(
            num_scalar_prefetch=0,
            grid=(1,),                                   # single invocation
            in_specs=[
                pl.BlockSpec((S * B, I), lambda i: (0, 0)),        # x (flat)
                pl.BlockSpec((I, 4 * HP), lambda i: (0, 0)),       # W_ih fused
                pl.BlockSpec(memory_space=pl.ANY),                 # W_hh (HBM)
                pl.BlockSpec((1, 4 * HP), lambda i: (0, 0)),       # bias fused
                pl.BlockSpec((HP, HEAD_PAD), lambda i: (0, 0)),    # head W
                pl.BlockSpec((1, HEAD_PAD), lambda i: (0, 0)),     # head bias
            ],
            out_specs=pl.BlockSpec((S * B, HEAD_PAD), lambda i: (0, 0)),
            scratch_shapes=[
                pltpu.VMEM((S * B, 4 * HP), jnp.float32),   # input projections
                pltpu.VMEM((S * B, HP), jnp.float32),       # hidden slab
                pltpu.VMEM((HP, 4 * HP), jnp.float32),      # W_hh VMEM copy
                pltpu.SemaphoreType.DMA,                    # W_hh DMA sem
            ],
        ),
        compiler_params=pltpu.CompilerParams(
            dimension_semantics=("arbitrary",)),
    )(x2d, w_ih_f, w_hh_f, b_f, w_head_p, b_head_p)

    return pred_pad[:, :OUT]


def reference_forward(x, w_ih, w_hh, b, w_head, b_head):
    """Pure-JAX reference (same math as torch nn.LSTM + Linear)."""
    S, B, _ = x.shape
    H = HIDDEN

    def step(carry, x_t):
        h, c = carry
        gates = [x_t @ w_ih[k] + h @ w_hh[k] + b[k] for k in range(4)]
        i_g = jax.nn.sigmoid(gates[0])
        f_g = jax.nn.sigmoid(gates[1])
        g_g = jnp.tanh(gates[2])
        o_g = jax.nn.sigmoid(gates[3])
        c_new = f_g * c + i_g * g_g
        h_new = o_g * jnp.tanh(c_new)
        return (h_new, c_new), h_new

    init = (jnp.zeros((B, H), jnp.float32), jnp.zeros((B, H), jnp.float32))
    _, hs = lax.scan(step, init, x)
    outputs = hs.reshape(S * B, H)
    return outputs @ w_head + b_head


def init_params(key):
    """Deterministic init mirroring nn.LSTM(2,100) / nn.Linear(100,2) shapes.

    PyTorch stores weight_ih_l0 as (4H, I) and weight_hh_l0 as (4H, H) with
    gate order [i, f, g, o]; here we keep the transposed, gate-stacked layout
    (4, I, H) / (4, H, H).  The wrapper fuses/pads these for the kernel.
    """
    ks = jax.random.split(key, 6)
    bound = 1.0 / jnp.sqrt(jnp.float32(HIDDEN))
    w_ih = jax.random.uniform(ks[0], (4, INPUT_SIZE, HIDDEN), jnp.float32,
                              -bound, bound)
    w_hh = jax.random.uniform(ks[1], (4, HIDDEN, HIDDEN), jnp.float32,
                              -bound, bound)
    b_ih = jax.random.uniform(ks[2], (4, 1, HIDDEN), jnp.float32, -bound, bound)
    b_hh = jax.random.uniform(ks[3], (4, 1, HIDDEN), jnp.float32, -bound, bound)
    b = b_ih + b_hh   # biases only ever appear summed
    w_head = jax.random.uniform(ks[4], (HIDDEN, OUT), jnp.float32,
                                -bound, bound)
    b_head = jax.random.uniform(ks[5], (1, OUT), jnp.float32, -bound, bound)
    return w_ih, w_hh, b, w_head, b_head


if __name__ == "__main__":
    key = jax.random.PRNGKey(0)
    k_x, k_p = jax.random.split(key)

    SEQ, BATCH = 8, 8
    x = jax.random.normal(k_x, (SEQ, BATCH, INPUT_SIZE), jnp.float32)

    params = init_params(k_p)

    pred = lstm_forward(x, *params)
    pred = jax.block_until_ready(pred)

    ref = reference_forward(x, *params)
    assert pred.shape == (SEQ * BATCH, OUT), pred.shape
    assert jnp.allclose(pred, ref, atol=1e-5, rtol=1e-5), \
        float(jnp.max(jnp.abs(pred - ref)))

    print("KERNEL_OK")
</pallas_src>

<mosaic_0001>
module attributes {stable_mosaic.version = 11 : i64} {
  func.func @lstm_kernel(%arg0: i32, %arg1: memref<64x2xf32, #tpu.memory_space<vmem>>, %arg2: memref<2x512xf32, #tpu.memory_space<vmem>>, %arg3: memref<128x512xf32, #tpu.memory_space<any>>, %arg4: memref<1x512xf32, #tpu.memory_space<vmem>>, %arg5: memref<128x128xf32, #tpu.memory_space<vmem>>, %arg6: memref<1x128xf32, #tpu.memory_space<vmem>>, %arg7: memref<64x128xf32, #tpu.memory_space<vmem>>, %arg8: memref<64x512xf32, #tpu.memory_space<vmem>>, %arg9: memref<64x128xf32, #tpu.memory_space<vmem>>, %arg10: memref<128x512xf32, #tpu.memory_space<vmem>>, %arg11: memref<!tpu.dma_semaphore, #tpu.memory_space<semaphore_mem>>) attributes {dimension_semantics = [#tpu.dimension_semantics<arbitrary>], iteration_bounds = array<i64: 1>, scalar_prefetch = 0 : i64, scratch_operands = 4 : i64, tpu.core_type = #tpu.core_type<tc>, window_params = [{pipeline_mode = #tpu.pipeline_mode<synchronous>, transform_indices = @transform_0, window_bounds = array<i64: 64, 2>}, {pipeline_mode = #tpu.pipeline_mode<synchronous>, transform_indices = @transform_1, window_bounds = array<i64: 2, 512>}, {}, {pipeline_mode = #tpu.pipeline_mode<synchronous>, transform_indices = @transform_3, window_bounds = array<i64: 1, 512>}, {pipeline_mode = #tpu.pipeline_mode<synchronous>, transform_indices = @transform_4, window_bounds = array<i64: 128, 128>}, {pipeline_mode = #tpu.pipeline_mode<synchronous>, transform_indices = @transform_5, window_bounds = array<i64: 1, 128>}, {pipeline_mode = #tpu.pipeline_mode<synchronous>, transform_indices = @transform_6, window_bounds = array<i64: 64, 128>}]} {
    tpu.enqueue_dma source(%arg3 : memref<128x512xf32, #tpu.memory_space<any>>) target(%arg10 : memref<128x512xf32, #tpu.memory_space<vmem>>) target_semaphore(%arg11 : memref<!tpu.dma_semaphore, #tpu.memory_space<semaphore_mem>>)
    %c0 = arith.constant 0 : index
    %c0_0 = arith.constant 0 : index
    %0 = vector.load %arg1[%c0, %c0_0] : memref<64x2xf32, #tpu.memory_space<vmem>>, vector<64x2xf32>
    %c0_1 = arith.constant 0 : index
    %c0_2 = arith.constant 0 : index
    %1 = vector.load %arg2[%c0_1, %c0_2] : memref<2x512xf32, #tpu.memory_space<vmem>>, vector<2x512xf32>
    %cst = arith.constant dense<0.000000e+00> : vector<64x512xf32>
    %2 = tpu.matmul %0, %1, %cst {dimension_numbers = #tpu.dot_dimension_numbers<[1], [0], [0], [1], [0, 0, 1, 1], [], []>} : vector<64x2xf32>, vector<2x512xf32>, vector<64x512xf32> -> vector<64x512xf32>
    %c0_3 = arith.constant 0 : index
    %c0_4 = arith.constant 0 : index
    %3 = vector.load %arg4[%c0_3, %c0_4] : memref<1x512xf32, #tpu.memory_space<vmem>>, vector<1x512xf32>
    %4 = vector.broadcast %3 : vector<1x512xf32> to vector<64x512xf32>
    %5 = arith.addf %2, %4 : vector<64x512xf32>
    %c0_5 = arith.constant 0 : index
    %c0_6 = arith.constant 0 : index
    %6 = vector.load %arg8[%c0_5, %c0_6] : memref<64x512xf32, #tpu.memory_space<vmem>>, vector<64x512xf32>
    tpu.vector_store %arg8[%c0_5, %c0_6], %5 {strides = array<i32>} : memref<64x512xf32, #tpu.memory_space<vmem>>, vector<64x512xf32>,
    %c0_7 = arith.constant 0 : index
    %c0_8 = arith.constant 0 : index
    %7 = vector.load %arg8[%c0_7, %c0_8] : memref<64x512xf32, #tpu.memory_space<vmem>>, vector<8x512xf32>
    %8 = vector.extract_strided_slice %7 {offsets = [0, 0], sizes = [8, 384], strides = [1, 1]} : vector<8x512xf32> to vector<8x384xf32>
    %9 = arith.negf %8 : vector<8x384xf32>
    %10 = math.exp %9 : vector<8x384xf32>
    %cst_9 = arith.constant 1.000000e+00 : f32
    %11 = vector.broadcast %cst_9 : f32 to vector<8x384xf32>
    %12 = arith.addf %11, %10 : vector<8x384xf32>
    %13 = arith.divf %11, %12 : vector<8x384xf32>
    %14 = vector.extract_strided_slice %13 {offsets = [0, 0], sizes = [8, 128], strides = [1, 1]} : vector<8x384xf32> to vector<8x128xf32>
    %15 = vector.extract_strided_slice %13 {offsets = [0, 256], sizes = [8, 128], strides = [1, 1]} : vector<8x384xf32> to vector<8x128xf32>
    %16 = vector.extract_strided_slice %7 {offsets = [0, 384], sizes = [8, 128], strides = [1, 1]} : vector<8x512xf32> to vector<8x128xf32>
    %17 = math.tanh %16 : vector<8x128xf32>
    %18 = arith.mulf %14, %17 : vector<8x128xf32>
    %19 = math.tanh %18 : vector<8x128xf32>
    %20 = arith.mulf %15, %19 : vector<8x128xf32>
    %c0_10 = arith.constant 0 : index
    %c0_11 = arith.constant 0 : index
    %21 = vector.load %arg9[%c0_10, %c0_11] : memref<64x128xf32, #tpu.memory_space<vmem>>, vector<8x128xf32>
    tpu.vector_store %arg9[%c0_10, %c0_11], %20 {strides = array<i32>} : memref<64x128xf32, #tpu.memory_space<vmem>>, vector<8x128xf32>,
    tpu.wait_dma2 semaphore(%arg11 : memref<!tpu.dma_semaphore, #tpu.memory_space<semaphore_mem>>) src(%arg3 : memref<128x512xf32, #tpu.memory_space<any>>) dst(%arg10 : memref<128x512xf32, #tpu.memory_space<vmem>>)
    %c1_i32 = arith.constant 1 : i32
    %c8_i32 = arith.constant 8 : i32
    %22 = arith.muli %c1_i32, %c8_i32 : i32
    %23 = tpu.assume_multiple %22, 8 : i32
    %24 = arith.index_cast %23 : i32 to index
    %c0_12 = arith.constant 0 : index
    %25 = vector.load %arg8[%24, %c0_12] : memref<64x512xf32, #tpu.memory_space<vmem>>, vector<8x512xf32>
    %c0_13 = arith.constant 0 : index
    %c0_14 = arith.constant 0 : index
    %26 = vector.load %arg10[%c0_13, %c0_14] : memref<128x512xf32, #tpu.memory_space<vmem>>, vector<128x512xf32>
    %cst_15 = arith.constant dense<0.000000e+00> : vector<8x512xf32>
    %27 = tpu.matmul %20, %26, %cst_15 {dimension_numbers = #tpu.dot_dimension_numbers<[1], [0], [0], [1], [0, 0, 1, 1], [], []>} : vector<8x128xf32>, vector<128x512xf32>, vector<8x512xf32> -> vector<8x512xf32>
    %28 = arith.addf %25, %27 : vector<8x512xf32>
    %29 = vector.extract_strided_slice %28 {offsets = [0, 0], sizes = [8, 384], strides = [1, 1]} : vector<8x512xf32> to vector<8x384xf32>
    %30 = arith.negf %29 : vector<8x384xf32>
    %31 = math.exp %30 : vector<8x384xf32>
    %cst_16 = arith.constant 1.000000e+00 : f32
    %32 = vector.broadcast %cst_16 : f32 to vector<8x384xf32>
    %33 = arith.addf %32, %31 : vector<8x384xf32>
    %34 = arith.divf %32, %33 : vector<8x384xf32>
    %35 = vector.extract_strided_slice %34 {offsets = [0, 0], sizes = [8, 128], strides = [1, 1]} : vector<8x384xf32> to vector<8x128xf32>
    %36 = vector.extract_strided_slice %34 {offsets = [0, 128], sizes = [8, 128], strides = [1, 1]} : vector<8x384xf32> to vector<8x128xf32>
    %37 = vector.extract_strided_slice %34 {offsets = [0, 256], sizes = [8, 128], strides = [1, 1]} : vector<8x384xf32> to vector<8x128xf32>
    %38 = vector.extract_strided_slice %28 {offsets = [0, 384], sizes = [8, 128], strides = [1, 1]} : vector<8x512xf32> to vector<8x128xf32>
    %39 = math.tanh %38 : vector<8x128xf32>
    %40 = arith.mulf %36, %18 : vector<8x128xf32>
    %41 = arith.mulf %35, %39 : vector<8x128xf32>
    %42 = arith.addf %40, %41 : vector<8x128xf32>
    %43 = math.tanh %42 : vector<8x128xf32>
    %44 = arith.mulf %37, %43 : vector<8x128xf32>
    %45 = arith.index_cast %23 : i32 to index
    %c0_17 = arith.constant 0 : index
    %46 = vector.load %arg9[%45, %c0_17] : memref<64x128xf32, #tpu.memory_space<vmem>>, vector<8x128xf32>
    tpu.vector_store %arg9[%45, %c0_17], %44 {strides = array<i32>} : memref<64x128xf32, #tpu.memory_space<vmem>>, vector<8x128xf32>,
    %c2_i32 = arith.constant 2 : i32
    %c8_i32_18 = arith.constant 8 : i32
    %47 = arith.muli %c2_i32, %c8_i32_18 : i32
    %48 = tpu.assume_multiple %47, 8 : i32
    %49 = arith.index_cast %48 : i32 to index
    %c0_19 = arith.constant 0 : index
    %50 = vector.load %arg8[%49, %c0_19] : memref<64x512xf32, #tpu.memory_space<vmem>>, vector<8x512xf32>
    %c0_20 = arith.constant 0 : index
    %c0_21 = arith.constant 0 : index
    %51 = vector.load %arg10[%c0_20, %c0_21] : memref<128x512xf32, #tpu.memory_space<vmem>>, vector<128x512xf32>
    %cst_22 = arith.constant dense<0.000000e+00> : vector<8x512xf32>
    %52 = tpu.matmul %44, %51, %cst_22 {dimension_numbers = #tpu.dot_dimension_numbers<[1], [0], [0], [1], [0, 0, 1, 1], [], []>} : vector<8x128xf32>, vector<128x512xf32>, vector<8x512xf32> -> vector<8x512xf32>
    %53 = arith.addf %50, %52 : vector<8x512xf32>
    %54 = vector.extract_strided_slice %53 {offsets = [0, 0], sizes = [8, 384], strides = [1, 1]} : vector<8x512xf32> to vector<8x384xf32>
    %55 = arith.negf %54 : vector<8x384xf32>
    %56 = math.exp %55 : vector<8x384xf32>
    %cst_23 = arith.constant 1.000000e+00 : f32
    %57 = vector.broadcast %cst_23 : f32 to vector<8x384xf32>
    %58 = arith.addf %57, %56 : vector<8x384xf32>
    %59 = arith.divf %57, %58 : vector<8x384xf32>
    %60 = vector.extract_strided_slice %59 {offsets = [0, 0], sizes = [8, 128], strides = [1, 1]} : vector<8x384xf32> to vector<8x128xf32>
    %61 = vector.extract_strided_slice %59 {offsets = [0, 128], sizes = [8, 128], strides = [1, 1]} : vector<8x384xf32> to vector<8x128xf32>
    %62 = vector.extract_strided_slice %59 {offsets = [0, 256], sizes = [8, 128], strides = [1, 1]} : vector<8x384xf32> to vector<8x128xf32>
    %63 = vector.extract_strided_slice %53 {offsets = [0, 384], sizes = [8, 128], strides = [1, 1]} : vector<8x512xf32> to vector<8x128xf32>
    %64 = math.tanh %63 : vector<8x128xf32>
    %65 = arith.mulf %61, %42 : vector<8x128xf32>
    %66 = arith.mulf %60, %64 : vector<8x128xf32>
    %67 = arith.addf %65, %66 : vector<8x128xf32>
    %68 = math.tanh %67 : vector<8x128xf32>
    %69 = arith.mulf %62, %68 : vector<8x128xf32>
    %70 = arith.index_cast %48 : i32 to index
    %c0_24 = arith.constant 0 : index
    %71 = vector.load %arg9[%70, %c0_24] : memref<64x128xf32, #tpu.memory_space<vmem>>, vector<8x128xf32>
    tpu.vector_store %arg9[%70, %c0_24], %69 {strides = array<i32>} : memref<64x128xf32, #tpu.memory_space<vmem>>, vector<8x128xf32>,
    %c3_i32 = arith.constant 3 : i32
    %c8_i32_25 = arith.constant 8 : i32
    %72 = arith.muli %c3_i32, %c8_i32_25 : i32
    %73 = tpu.assume_multiple %72, 8 : i32
    %74 = arith.index_cast %73 : i32 to index
    %c0_26 = arith.constant 0 : index
    %75 = vector.load %arg8[%74, %c0_26] : memref<64x512xf32, #tpu.memory_space<vmem>>, vector<8x512xf32>
    %c0_27 = arith.constant 0 : index
    %c0_28 = arith.constant 0 : index
    %76 = vector.load %arg10[%c0_27, %c0_28] : memref<128x512xf32, #tpu.memory_space<vmem>>, vector<128x512xf32>
    %cst_29 = arith.constant dense<0.000000e+00> : vector<8x512xf32>
    %77 = tpu.matmul %69, %76, %cst_29 {dimension_numbers = #tpu.dot_dimension_numbers<[1], [0], [0], [1], [0, 0, 1, 1], [], []>} : vector<8x128xf32>, vector<128x512xf32>, vector<8x512xf32> -> vector<8x512xf32>
    %78 = arith.addf %75, %77 : vector<8x512xf32>
    %79 = vector.extract_strided_slice %78 {offsets = [0, 0], sizes = [8, 384], strides = [1, 1]} : vector<8x512xf32> to vector<8x384xf32>
    %80 = arith.negf %79 : vector<8x384xf32>
    %81 = math.exp %80 : vector<8x384xf32>
    %cst_30 = arith.constant 1.000000e+00 : f32
    %82 = vector.broadcast %cst_30 : f32 to vector<8x384xf32>
    %83 = arith.addf %82, %81 : vector<8x384xf32>
    %84 = arith.divf %82, %83 : vector<8x384xf32>
    %85 = vector.extract_strided_slice %84 {offsets = [0, 0], sizes = [8, 128], strides = [1, 1]} : vector<8x384xf32> to vector<8x128xf32>
    %86 = vector.extract_strided_slice %84 {offsets = [0, 128], sizes = [8, 128], strides = [1, 1]} : vector<8x384xf32> to vector<8x128xf32>
    %87 = vector.extract_strided_slice %84 {offsets = [0, 256], sizes = [8, 128], strides = [1, 1]} : vector<8x384xf32> to vector<8x128xf32>
    %88 = vector.extract_strided_slice %78 {offsets = [0, 384], sizes = [8, 128], strides = [1, 1]} : vector<8x512xf32> to vector<8x128xf32>
    %89 = math.tanh %88 : vector<8x128xf32>
    %90 = arith.mulf %86, %67 : vector<8x128xf32>
    %91 = arith.mulf %85, %89 : vector<8x128xf32>
    %92 = arith.addf %90, %91 : vector<8x128xf32>
    %93 = math.tanh %92 : vector<8x128xf32>
    %94 = arith.mulf %87, %93 : vector<8x128xf32>
    %95 = arith.index_cast %73 : i32 to index
    %c0_31 = arith.constant 0 : index
    %96 = vector.load %arg9[%95, %c0_31] : memref<64x128xf32, #tpu.memory_space<vmem>>, vector<8x128xf32>
    tpu.vector_store %arg9[%95, %c0_31], %94 {strides = array<i32>} : memref<64x128xf32, #tpu.memory_space<vmem>>, vector<8x128xf32>,
    %c4_i32 = arith.constant 4 : i32
    %c8_i32_32 = arith.constant 8 : i32
    %97 = arith.muli %c4_i32, %c8_i32_32 : i32
    %98 = tpu.assume_multiple %97, 8 : i32
    %99 = arith.index_cast %98 : i32 to index
    %c0_33 = arith.constant 0 : index
    %100 = vector.load %arg8[%99, %c0_33] : memref<64x512xf32, #tpu.memory_space<vmem>>, vector<8x512xf32>
    %c0_34 = arith.constant 0 : index
    %c0_35 = arith.constant 0 : index
    %101 = vector.load %arg10[%c0_34, %c0_35] : memref<128x512xf32, #tpu.memory_space<vmem>>, vector<128x512xf32>
    %cst_36 = arith.constant dense<0.000000e+00> : vector<8x512xf32>
    %102 = tpu.matmul %94, %101, %cst_36 {dimension_numbers = #tpu.dot_dimension_numbers<[1], [0], [0], [1], [0, 0, 1, 1], [], []>} : vector<8x128xf32>, vector<128x512xf32>, vector<8x512xf32> -> vector<8x512xf32>
    %103 = arith.addf %100, %102 : vector<8x512xf32>
    %104 = vector.extract_strided_slice %103 {offsets = [0, 0], sizes = [8, 384], strides = [1, 1]} : vector<8x512xf32> to vector<8x384xf32>
    %105 = arith.negf %104 : vector<8x384xf32>
    %106 = math.exp %105 : vector<8x384xf32>
    %cst_37 = arith.constant 1.000000e+00 : f32
    %107 = vector.broadcast %cst_37 : f32 to vector<8x384xf32>
    %108 = arith.addf %107, %106 : vector<8x384xf32>
    %109 = arith.divf %107, %108 : vector<8x384xf32>
    %110 = vector.extract_strided_slice %109 {offsets = [0, 0], sizes = [8, 128], strides = [1, 1]} : vector<8x384xf32> to vector<8x128xf32>
    %111 = vector.extract_strided_slice %109 {offsets = [0, 128], sizes = [8, 128], strides = [1, 1]} : vector<8x384xf32> to vector<8x128xf32>
    %112 = vector.extract_strided_slice %109 {offsets = [0, 256], sizes = [8, 128], strides = [1, 1]} : vector<8x384xf32> to vector<8x128xf32>
    %113 = vector.extract_strided_slice %103 {offsets = [0, 384], sizes = [8, 128], strides = [1, 1]} : vector<8x512xf32> to vector<8x128xf32>
    %114 = math.tanh %113 : vector<8x128xf32>
    %115 = arith.mulf %111, %92 : vector<8x128xf32>
    %116 = arith.mulf %110, %114 : vector<8x128xf32>
    %117 = arith.addf %115, %116 : vector<8x128xf32>
    %118 = math.tanh %117 : vector<8x128xf32>
    %119 = arith.mulf %112, %118 : vector<8x128xf32>
    %120 = arith.index_cast %98 : i32 to index
    %c0_38 = arith.constant 0 : index
    %121 = vector.load %arg9[%120, %c0_38] : memref<64x128xf32, #tpu.memory_space<vmem>>, vector<8x128xf32>
    tpu.vector_store %arg9[%120, %c0_38], %119 {strides = array<i32>} : memref<64x128xf32, #tpu.memory_space<vmem>>, vector<8x128xf32>,
    %c5_i32 = arith.constant 5 : i32
    %c8_i32_39 = arith.constant 8 : i32
    %122 = arith.muli %c5_i32, %c8_i32_39 : i32
    %123 = tpu.assume_multiple %122, 8 : i32
    %124 = arith.index_cast %123 : i32 to index
    %c0_40 = arith.constant 0 : index
    %125 = vector.load %arg8[%124, %c0_40] : memref<64x512xf32, #tpu.memory_space<vmem>>, vector<8x512xf32>
    %c0_41 = arith.constant 0 : index
    %c0_42 = arith.constant 0 : index
    %126 = vector.load %arg10[%c0_41, %c0_42] : memref<128x512xf32, #tpu.memory_space<vmem>>, vector<128x512xf32>
    %cst_43 = arith.constant dense<0.000000e+00> : vector<8x512xf32>
    %127 = tpu.matmul %119, %126, %cst_43 {dimension_numbers = #tpu.dot_dimension_numbers<[1], [0], [0], [1], [0, 0, 1, 1], [], []>} : vector<8x128xf32>, vector<128x512xf32>, vector<8x512xf32> -> vector<8x512xf32>
    %128 = arith.addf %125, %127 : vector<8x512xf32>
    %129 = vector.extract_strided_slice %128 {offsets = [0, 0], sizes = [8, 384], strides = [1, 1]} : vector<8x512xf32> to vector<8x384xf32>
    %130 = arith.negf %129 : vector<8x384xf32>
    %131 = math.exp %130 : vector<8x384xf32>
    %cst_44 = arith.constant 1.000000e+00 : f32
    %132 = vector.broadcast %cst_44 : f32 to vector<8x384xf32>
    %133 = arith.addf %132, %131 : vector<8x384xf32>
    %134 = arith.divf %132, %133 : vector<8x384xf32>
    %135 = vector.extract_strided_slice %134 {offsets = [0, 0], sizes = [8, 128], strides = [1, 1]} : vector<8x384xf32> to vector<8x128xf32>
    %136 = vector.extract_strided_slice %134 {offsets = [0, 128], sizes = [8, 128], strides = [1, 1]} : vector<8x384xf32> to vector<8x128xf32>
    %137 = vector.extract_strided_slice %134 {offsets = [0, 256], sizes = [8, 128], strides = [1, 1]} : vector<8x384xf32> to vector<8x128xf32>
    %138 = vector.extract_strided_slice %128 {offsets = [0, 384], sizes = [8, 128], strides = [1, 1]} : vector<8x512xf32> to vector<8x128xf32>
    %139 = math.tanh %138 : vector<8x128xf32>
    %140 = arith.mulf %136, %117 : vector<8x128xf32>
    %141 = arith.mulf %135, %139 : vector<8x128xf32>
    %142 = arith.addf %140, %141 : vector<8x128xf32>
    %143 = math.tanh %142 : vector<8x128xf32>
    %144 = arith.mulf %137, %143 : vector<8x128xf32>
    %145 = arith.index_cast %123 : i32 to index
    %c0_45 = arith.constant 0 : index
    %146 = vector.load %arg9[%145, %c0_45] : memref<64x128xf32, #tpu.memory_space<vmem>>, vector<8x128xf32>
    tpu.vector_store %arg9[%145, %c0_45], %144 {strides = array<i32>} : memref<64x128xf32, #tpu.memory_space<vmem>>, vector<8x128xf32>,
    %c6_i32 = arith.constant 6 : i32
    %c8_i32_46 = arith.constant 8 : i32
    %147 = arith.muli %c6_i32, %c8_i32_46 : i32
    %148 = tpu.assume_multiple %147, 8 : i32
    %149 = arith.index_cast %148 : i32 to index
    %c0_47 = arith.constant 0 : index
    %150 = vector.load %arg8[%149, %c0_47] : memref<64x512xf32, #tpu.memory_space<vmem>>, vector<8x512xf32>
    %c0_48 = arith.constant 0 : index
    %c0_49 = arith.constant 0 : index
    %151 = vector.load %arg10[%c0_48, %c0_49] : memref<128x512xf32, #tpu.memory_space<vmem>>, vector<128x512xf32>
    %cst_50 = arith.constant dense<0.000000e+00> : vector<8x512xf32>
    %152 = tpu.matmul %144, %151, %cst_50 {dimension_numbers = #tpu.dot_dimension_numbers<[1], [0], [0], [1], [0, 0, 1, 1], [], []>} : vector<8x128xf32>, vector<128x512xf32>, vector<8x512xf32> -> vector<8x512xf32>
    %153 = arith.addf %150, %152 : vector<8x512xf32>
    %154 = vector.extract_strided_slice %153 {offsets = [0, 0], sizes = [8, 384], strides = [1, 1]} : vector<8x512xf32> to vector<8x384xf32>
    %155 = arith.negf %154 : vector<8x384xf32>
    %156 = math.exp %155 : vector<8x384xf32>
    %cst_51 = arith.constant 1.000000e+00 : f32
    %157 = vector.broadcast %cst_51 : f32 to vector<8x384xf32>
    %158 = arith.addf %157, %156 : vector<8x384xf32>
    %159 = arith.divf %157, %158 : vector<8x384xf32>
    %160 = vector.extract_strided_slice %159 {offsets = [0, 0], sizes = [8, 128], strides = [1, 1]} : vector<8x384xf32> to vector<8x128xf32>
    %161 = vector.extract_strided_slice %159 {offsets = [0, 128], sizes = [8, 128], strides = [1, 1]} : vector<8x384xf32> to vector<8x128xf32>
    %162 = vector.extract_strided_slice %159 {offsets = [0, 256], sizes = [8, 128], strides = [1, 1]} : vector<8x384xf32> to vector<8x128xf32>
    %163 = vector.extract_strided_slice %153 {offsets = [0, 384], sizes = [8, 128], strides = [1, 1]} : vector<8x512xf32> to vector<8x128xf32>
    %164 = math.tanh %163 : vector<8x128xf32>
    %165 = arith.mulf %161, %142 : vector<8x128xf32>
    %166 = arith.mulf %160, %164 : vector<8x128xf32>
    %167 = arith.addf %165, %166 : vector<8x128xf32>
    %168 = math.tanh %167 : vector<8x128xf32>
    %169 = arith.mulf %162, %168 : vector<8x128xf32>
    %170 = arith.index_cast %148 : i32 to index
    %c0_52 = arith.constant 0 : index
    %171 = vector.load %arg9[%170, %c0_52] : memref<64x128xf32, #tpu.memory_space<vmem>>, vector<8x128xf32>
    tpu.vector_store %arg9[%170, %c0_52], %169 {strides = array<i32>} : memref<64x128xf32, #tpu.memory_space<vmem>>, vector<8x128xf32>,
    %c7_i32 = arith.constant 7 : i32
    %c8_i32_53 = arith.constant 8 : i32
    %172 = arith.muli %c7_i32, %c8_i32_53 : i32
    %173 = tpu.assume_multiple %172, 8 : i32
    %174 = arith.index_cast %173 : i32 to index
    %c0_54 = arith.constant 0 : index
    %175 = vector.load %arg8[%174, %c0_54] : memref<64x512xf32, #tpu.memory_space<vmem>>, vector<8x512xf32>
    %c0_55 = arith.constant 0 : index
    %c0_56 = arith.constant 0 : index
    %176 = vector.load %arg10[%c0_55, %c0_56] : memref<128x512xf32, #tpu.memory_space<vmem>>, vector<128x512xf32>
    %cst_57 = arith.constant dense<0.000000e+00> : vector<8x512xf32>
    %177 = tpu.matmul %169, %176, %cst_57 {dimension_numbers = #tpu.dot_dimension_numbers<[1], [0], [0], [1], [0, 0, 1, 1], [], []>} : vector<8x128xf32>, vector<128x512xf32>, vector<8x512xf32> -> vector<8x512xf32>
    %178 = arith.addf %175, %177 : vector<8x512xf32>
    %179 = vector.extract_strided_slice %178 {offsets = [0, 0], sizes = [8, 384], strides = [1, 1]} : vector<8x512xf32> to vector<8x384xf32>
    %180 = arith.negf %179 : vector<8x384xf32>
    %181 = math.exp %180 : vector<8x384xf32>
    %cst_58 = arith.constant 1.000000e+00 : f32
    %182 = vector.broadcast %cst_58 : f32 to vector<8x384xf32>
    %183 = arith.addf %182, %181 : vector<8x384xf32>
    %184 = arith.divf %182, %183 : vector<8x384xf32>
    %185 = vector.extract_strided_slice %184 {offsets = [0, 0], sizes = [8, 128], strides = [1, 1]} : vector<8x384xf32> to vector<8x128xf32>
    %186 = vector.extract_strided_slice %184 {offsets = [0, 128], sizes = [8, 128], strides = [1, 1]} : vector<8x384xf32> to vector<8x128xf32>
    %187 = vector.extract_strided_slice %184 {offsets = [0, 256], sizes = [8, 128], strides = [1, 1]} : vector<8x384xf32> to vector<8x128xf32>
    %188 = vector.extract_strided_slice %178 {offsets = [0, 384], sizes = [8, 128], strides = [1, 1]} : vector<8x512xf32> to vector<8x128xf32>
    %189 = math.tanh %188 : vector<8x128xf32>
    %190 = arith.mulf %186, %167 : vector<8x128xf32>
    %191 = arith.mulf %185, %189 : vector<8x128xf32>
    %192 = arith.addf %190, %191 : vector<8x128xf32>
    %193 = math.tanh %192 : vector<8x128xf32>
    %194 = arith.mulf %187, %193 : vector<8x128xf32>
    %195 = arith.index_cast %173 : i32 to index
    %c0_59 = arith.constant 0 : index
    %196 = vector.load %arg9[%195, %c0_59] : memref<64x128xf32, #tpu.memory_space<vmem>>, vector<8x128xf32>
    tpu.vector_store %arg9[%195, %c0_59], %194 {strides = array<i32>} : memref<64x128xf32, #tpu.memory_space<vmem>>, vector<8x128xf32>,
    %c7_i32_60 = arith.constant 7 : i32
    %c0_61 = arith.constant 0 : index
    %c0_62 = arith.constant 0 : index
    %197 = vector.load %arg9[%c0_61, %c0_62] : memref<64x128xf32, #tpu.memory_space<vmem>>, vector<64x128xf32>
    %c0_63 = arith.constant 0 : index
    %c0_64 = arith.constant 0 : index
    %198 = vector.load %arg5[%c0_63, %c0_64] : memref<128x128xf32, #tpu.memory_space<vmem>>, vector<128x128xf32>
    %cst_65 = arith.constant dense<0.000000e+00> : vector<64x128xf32>
    %199 = tpu.matmul %197, %198, %cst_65 {dimension_numbers = #tpu.dot_dimension_numbers<[1], [0], [0], [1], [0, 0, 1, 1], [], []>} : vector<64x128xf32>, vector<128x128xf32>, vector<64x128xf32> -> vector<64x128xf32>
    %c0_66 = arith.constant 0 : index
    %c0_67 = arith.constant 0 : index
    %200 = vector.load %arg6[%c0_66, %c0_67] : memref<1x128xf32, #tpu.memory_space<vmem>>, vector<1x128xf32>
    %201 = vector.broadcast %200 : vector<1x128xf32> to vector<64x128xf32>
    %202 = arith.addf %199, %201 : vector<64x128xf32>
    %c0_68 = arith.constant 0 : index
    %c0_69 = arith.constant 0 : index
    %203 = vector.load %arg7[%c0_68, %c0_69] : memref<64x128xf32, #tpu.memory_space<vmem>>, vector<64x128xf32>
    tpu.vector_store %arg7[%c0_68, %c0_69], %202 {strides = array<i32>} : memref<64x128xf32, #tpu.memory_space<vmem>>, vector<64x128xf32>,
    return
  }
  func.func @transform_0(%arg0: i32) -> (i32, i32) {
    %c0_i32 = arith.constant 0 : i32
    %c0_i32_0 = arith.constant 0 : i32
    %c0_i32_1 = arith.constant 0 : i32
    return %c0_i32, %c0_i32_0 : i32, i32
  }
  func.func @transform_1(%arg0: i32) -> (i32, i32) {
    %c0_i32 = arith.constant 0 : i32
    %c0_i32_0 = arith.constant 0 : i32
    %c0_i32_1 = arith.constant 0 : i32
    return %c0_i32, %c0_i32_0 : i32, i32
  }
  func.func @transform_3(%arg0: i32) -> (i32, i32) {
    %c0_i32 = arith.constant 0 : i32
    %c0_i32_0 = arith.constant 0 : i32
    %c0_i32_1 = arith.constant 0 : i32
    return %c0_i32, %c0_i32_0 : i32, i32
  }
  func.func @transform_4(%arg0: i32) -> (i32, i32) {
    %c0_i32 = arith.constant 0 : i32
    %c0_i32_0 = arith.constant 0 : i32
    %c0_i32_1 = arith.constant 0 : i32
    return %c0_i32, %c0_i32_0 : i32, i32
  }
  func.func @transform_5(%arg0: i32) -> (i32, i32) {
    %c0_i32 = arith.constant 0 : i32
    %c0_i32_0 = arith.constant 0 : i32
    %c0_i32_1 = arith.constant 0 : i32
    return %c0_i32, %c0_i32_0 : i32, i32
  }
  func.func @transform_6(%arg0: i32) -> (i32, i32) {
    %c0_i32 = arith.constant 0 : i32
    %c0_i32_0 = arith.constant 0 : i32
    %c0_i32_1 = arith.constant 0 : i32
    return %c0_i32, %c0_i32_0 : i32, i32
  }
}

</mosaic_0001>

<llo_original>
// kernel: tpu_custom_call.1
$region0: #{tpu_custom_call.1}
  #allocation0 [shape = 'u32[]', space=smem, size = 0x4, offset = 0x4, fixed_abs, tag = 'smem constant byte address 0x4 - core index']
  #allocation1 [shape = 'u32[144,128]{1,0:T(1,128)}', space=vmem, size = 0x12000, scoped, tag = 'internal scratch']
  #allocation2 [shape = 'f32[64,512]{1,0:T(8,128)}', space=vmem, size = 0x20000, scoped, tag = 'scratch operand']
  #allocation3 [shape = 'f32[64,128]{1,0:T(8,128)}', space=vmem, size = 0x8000, scoped, tag = 'scratch operand']
  #allocation4 [shape = 'f32[128,512]{1,0:T(8,128)}', space=vmem, size = 0x40000, scoped, tag = 'scratch operand']
  #allocation5 [shape = 's32[1]{0}', space=sflag, size = 0x4, scoped, tag = 'scratch operand']
  #allocation10 [shape = 's32[]', space=sflag, size = 0x4, offset = 0, fixed_abs, tag = 'sflag constant byte address 0x0 - dummy sync flag']
  #allocation11 [shape = 's32[]', space=sflag, size = 0x4, offset = 0, fixed_abs, tag = 'sflag constant byte address 0x0 - dummy sync flag']
  #allocation12 [shape = 'u32[]', space=smem, size = 0x4, offset = 0x44, fixed_abs, tag = 'smem constant byte address 0x44 - assertion arg 0']
  #allocation13 [shape = 'u32[]', space=smem, size = 0x4, offset = 0x48, fixed_abs, tag = 'smem constant byte address 0x48 - assertion arg 1']
  %s0 = inlined_call_operand.vmem [shape: f32[64,2], index: 0, kind: input, shape index: {}]
  %s1 = inlined_call_operand.vmem [shape: f32[2,512], index: 1, kind: input, shape index: {}]
  %s2 = inlined_call_operand.hbm [shape: f32[128,512], index: 2, kind: input, shape index: {}]
  %s3 = inlined_call_operand.vmem [shape: f32[1,512], index: 3, kind: input, shape index: {}]
  %s4 = inlined_call_operand.hbm [shape: f32[128,128], index: 4, kind: input, shape index: {}]
  %s5 = inlined_call_operand.vmem [shape: f32[1,128], index: 5, kind: input, shape index: {}]
  %s6 = inlined_call_operand.hbm [shape: f32[64,128], index: 6, kind: output, shape index: {}]
  %s7 = sld [smem:[#allocation0]]
  $region38: #{tpu_custom_call.1} parent=0
    _
  %s9 = ssub.s32 1, %s7
  %s10 = scalar_select 0, %s9, %s7
  $region1: #{tpu_custom_call.1} parent=0
    #allocation6 [shape = 'u8[65536]{0}', space=vmem, size = 0x10000, scoped, tag = 'input window, operand 4, single buffered']
    #allocation7 [shape = 's32[1]{0}', space=sflag, size = 0x4, scoped, tag = 'scoped memory for tpu_custom_call.1']
    #allocation8 [shape = 's32[1]{0}', space=sflag, size = 0x4, scoped, tag = 'scoped memory for tpu_custom_call.1']
    #allocation9 [shape = 'u8[32768]{0}', space=vmem, size = 0x8000, scoped, tag = 'output window, operand 0, single buffered']
    %11 = vsyncpa [#allocation7], 0
    %12 = vsyncpa [#allocation8], 0
    // Predicated region
    $region2: #{tpu_custom_call.1} parent=1 // pred_check
      _
    $region3: #{tpu_custom_call.1} parent=1 // pred_check_branch
      %14 = sbr.rel (0) target = $region5
    $region4: #{tpu_custom_call.1} parent=1 // pred_region
      _
    $region5: #{tpu_custom_call.1} parent=1 // pred_fallthru
      _
    // Predicated region
    $region6: #{tpu_custom_call.1} parent=1 // pred_check
      _
    $region7: #{tpu_custom_call.1} parent=1 // pred_check_branch
      %16 = sbr.rel (0) target = $region9
    $region8: #{tpu_custom_call.1} parent=1 // pred_region
      _
    $region9: #{tpu_custom_call.1} parent=1 // pred_fallthru
      _
    // Predicated region
    $region10: #{tpu_custom_call.1} parent=1 // pred_check
      _
    $region11: #{tpu_custom_call.1} parent=1 // pred_check_branch
      %18 = sbr.rel (0) target = $region13
    $region12: #{tpu_custom_call.1} parent=1 // pred_region
      _
    $region13: #{tpu_custom_call.1} parent=1 // pred_fallthru
      _
    // Predicated region
    $region14: #{tpu_custom_call.1} parent=1 // pred_check
      _
    $region15: #{tpu_custom_call.1} parent=1 // pred_check_branch
      %20 = sbr.rel (0) target = $region17
    $region16: #{tpu_custom_call.1} parent=1 // pred_region
      %s22 = ssub.s32 2048, 2048
      %23 = vsyncadd [#allocation7], %s22
      %s24 = sshll.u32 [#allocation6], 4
      %s25 = int_to_ptr.vmem [resolvable:$true] %s24
      %30 = dma.hbm_to_vmem [thread:$0]  %s4, 2048, %s25, [#allocation7], 128, 128, 8
    $region17: #{tpu_custom_call.1} parent=1 // pred_fallthru
      _
    // Predicated region
    $region18: #{tpu_custom_call.1} parent=1 // pred_check
      _
    $region19: #{tpu_custom_call.1} parent=1 // pred_check_branch
      %32 = sbr.rel (0) target = $region21
    $region20: #{tpu_custom_call.1} parent=1 // pred_region
      _
    $region21: #{tpu_custom_call.1} parent=1 // pred_fallthru
      _
    // Predicated region
    $region22: #{tpu_custom_call.1} parent=1 // pred_check
      _
    $region23: #{tpu_custom_call.1} parent=1 // pred_check_branch
      %34 = sbr.rel (0) target = $region25
    $region24: #{tpu_custom_call.1} parent=1 // pred_region
      %35 = dma.done [#allocation7], 2048
    $region25: #{tpu_custom_call.1} parent=1 // pred_fallthru
      _
    // Predicated region
    $region26: #{tpu_custom_call.1} parent=1 // pred_check
      _
    $region27: #{tpu_custom_call.1} parent=1 // pred_check_branch
      %37 = sbr.rel target = $region29
    $region28: #{tpu_custom_call.1} parent=1 // pred_region
      %38 = sst [smem:[#allocation12]] [#allocation11]
      %39 = sst [smem:[#allocation13]] [#allocation10]
    $region29: #{tpu_custom_call.1} parent=1 // pred_fallthru
      _
    %41 = shalt.err (0)
    %s43 = sshll.u32 [#allocation4], 4
    %s44 = int_to_ptr.vmem [resolvable:$true] %s43
    %46 = dma.hbm_to_vmem [thread:$0]  %s2, 8192, %s44, [#allocation5]
    %v47 = vld [vmem:[%s0] sm:$0xff]
    %v48 = vld [vmem:[%s0 + $0x8] sm:$0xff]
    %v49 = vld [vmem:[%s0 + $0x10] sm:$0xff]
    %v50 = vld [vmem:[%s0 + $0x18] sm:$0xff]
    %v51 = vld [vmem:[%s0 + $0x20] sm:$0xff]
    %v52 = vld [vmem:[%s0 + $0x28] sm:$0xff]
    %v53 = vld [vmem:[%s0 + $0x30] sm:$0xff]
    %v54 = vld [vmem:[%s0 + $0x38] sm:$0xff]
    %v55 = vld [vmem:[%s1] sm:$0xff]
    %v56 = vld [vmem:[%s3] sm:$0xf]
    %v58 = vlaneseq
    %v59 = vshrl.u32 %v58, 7
    %v60 = vsub.s32 0, %v59
    %v61 = vrot.slane %v56, %v60
    %v62 = vlaneseq
    %v63 = vshrl.u32 %v62, 7
    %v64 = vsub.s32 1, %v63
    %v65 = vrot.slane %v56, %v64
    %v66 = vlaneseq
    %v67 = vshrl.u32 %v66, 7
    %v68 = vsub.s32 2, %v67
    %v69 = vrot.slane %v56, %v68
    %v70 = vlaneseq
    %v71 = vshrl.u32 %v70, 7
    %v72 = vsub.s32 3, %v71
    %v73 = vrot.slane %v56, %v72
    %v79 = vcombine.high %v55, %v55
    %v81 = vunpack.c.l.s4 1983009808
    %v82 = vunpack.c.0.s8 %v81
    %v83 = vlaneseq
    %v84 = vshrl.u32 %v83, 7
    %v85 = vsub.s32 %v82, %v84
    %v86 = vrot.slane %v55, %v85
    %v88 = vunpack.c.l.s4 1983009808
    %v89 = vunpack.c.0.s8 %v88
    %v90 = vlaneseq
    %v91 = vshrl.u32 %v90, 7
    %v92 = vsub.s32 %v89, %v91
    %v93 = vrot.slane %v79, %v92
    %v94 = vcombine.high %v86, %v86
    %v95 = vcombine.high %v93, %v93
    %vm96 = vcmask 15360
    %v98 = vsel %vm96, %v47, 0
    %v101 = vsel %vm96, %v48, 0
    %v104 = vsel %vm96, %v49, 0
    %v107 = vsel %vm96, %v50, 0
    %v110 = vsel %vm96, %v51, 0
    %v113 = vsel %vm96, %v52, 0
    %v116 = vsel %vm96, %v53, 0
    %v119 = vsel %vm96, %v54, 0
    %vm121 = vcmask 1041408
    %v122 = vsel %vm121, %v86, 0
    %v124 = vsel %vm121, %v94, 0
    %v126 = vsel %vm121, %v93, 0
    %v128 = vsel %vm121, %v95, 0
    %130 = vmatprep.subr.mxu0 %v124
    %131 = vmatpush1.msra.mxu0 %v122
    %132 = vmatprep.subr.mxu0 0.0
    %133 = vmatpush1.msra.mxu0 0.0
    %134 = vmatprep.subr.mxu0 0.0
    %135 = vmatpush1.msra.mxu0 0.0
    %136 = vmatprep.subr.mxu0 0.0
    %137 = vmatpush1.msra.mxu0 0.0
    %138 = vmatprep.subr.mxu0 0.0
    %139 = vmatpush1.msra.mxu0 0.0
    %140 = vmatprep.subr.mxu0 0.0
    %141 = vmatpush1.msra.mxu0 0.0
    %142 = vmatprep.subr.mxu0 0.0
    %143 = vmatpush1.msra.mxu0 0.0
    %144 = vmatprep.subr.mxu0 0.0
    %145 = vmatpush1.msra.mxu0 0.0
    %146 = vmatprep.subr.mxu0 0.0
    %147 = vmatpush1.msra.mxu0 0.0
    %148 = vmatprep.subr.mxu0 0.0
    %149 = vmatpush1.msra.mxu0 0.0
    %150 = vmatprep.subr.mxu0 0.0
    %151 = vmatpush1.msra.mxu0 0.0
    %152 = vmatprep.subr.mxu0 0.0
    %153 = vmatpush1.msra.mxu0 0.0
    %154 = vmatprep.subr.mxu0 0.0
    %155 = vmatpush1.msra.mxu0 0.0
    %156 = vmatprep.subr.mxu0 0.0
    %157 = vmatpush1.msra.mxu0 0.0
    %158 = vmatprep.subr.mxu0 0.0
    %159 = vmatpush1.msra.mxu0 0.0
    %160 = vmatprep.subr.mxu0 0.0
    %161 = vmatpush1.msra.mxu0 0.0
    %162 = vmatprep.subr.mxu0 0.0
    %163 = vmatpush1.msra.mxu0 0.0
    %164 = vmatprep.subr.mxu0 0.0
    %165 = vmatpush1.msra.mxu0 0.0
    %166 = vmatprep.subr.mxu0 0.0
    %167 = vmatpush1.msra.mxu0 0.0
    %168 = vmatprep.subr.mxu0 0.0
    %169 = vmatpush1.msra.mxu0 0.0
    %170 = vmatprep.subr.mxu0 0.0
    %171 = vmatpush1.msra.mxu0 0.0
    %172 = vmatprep.subr.mxu0 0.0
    %173 = vmatpush1.msra.mxu0 0.0
    %174 = vmatprep.subr.mxu0 0.0
    %175 = vmatpush1.msra.mxu0 0.0
    %176 = vmatprep.subr.mxu0 0.0
    %177 = vmatpush1.msra.mxu0 0.0
    %178 = vmatprep.subr.mxu0 0.0
    %179 = vmatpush1.msra.mxu0 0.0
    %180 = vmatprep.subr.mxu0 0.0
    %181 = vmatpush1.msra.mxu0 0.0
    %182 = vmatprep.subr.mxu0 0.0
    %183 = vmatpush1.msra.mxu0 0.0
    %184 = vmatprep.subr.mxu0 0.0
    %185 = vmatpush1.msra.mxu0 0.0
    %186 = vmatprep.subr.mxu0 0.0
    %187 = vmatpush1.msra.mxu0 0.0
    %188 = vmatprep.subr.mxu0 0.0
    %189 = vmatpush1.msra.mxu0 0.0
    %190 = vmatprep.subr.mxu0 0.0
    %191 = vmatpush1.msra.mxu0 0.0
    %192 = vmatprep.subr.mxu0 0.0
    %193 = vmatpush1.msra.mxu0 0.0
    %194 = vmatprep.mubr.f32.mxu0 0.0
    %195 = vmatmul.mubr.f32.gmra.mrb[0].mxu0 %v98
    %v196 = vpop.f32.mrb[0].mxu0
    %v197 = vadd.f32 %v61, %v196
    %v198 = vpop.f32.mrb[0].mxu0
    %v199 = vadd.f32 %v65, %v198
    %200 = vmatprep.mubr.f32.mxu0 0.0
    %201 = vmatmul.mubr.f32.gmra.mrb[0].mxu0 %v101
    %v202 = vpop.f32.mrb[0].mxu0
    %v203 = vadd.f32 %v61, %v202
    %v204 = vpop.f32.mrb[0].mxu0
    %v205 = vadd.f32 %v65, %v204
    %206 = vmatprep.mubr.f32.mxu0 0.0
    %207 = vmatmul.mubr.f32.gmra.mrb[0].mxu0 %v104
    %v208 = vpop.f32.mrb[0].mxu0
    %v209 = vadd.f32 %v61, %v208
    %v210 = vpop.f32.mrb[0].mxu0
    %v211 = vadd.f32 %v65, %v210
    %212 = vmatprep.mubr.f32.mxu0 0.0
    %213 = vmatmul.mubr.f32.gmra.mrb[0].mxu0 %v107
    %v214 = vpop.f32.mrb[0].mxu0
    %v215 = vadd.f32 %v61, %v214
    %v216 = vpop.f32.mrb[0].mxu0
    %v217 = vadd.f32 %v65, %v216
    %218 = vmatprep.mubr.f32.mxu0 0.0
    %219 = vmatmul.mubr.f32.gmra.mrb[0].mxu0 %v110
    %v220 = vpop.f32.mrb[0].mxu0
    %v221 = vadd.f32 %v61, %v220
    %v222 = vpop.f32.mrb[0].mxu0
    %v223 = vadd.f32 %v65, %v222
    %224 = vmatprep.mubr.f32.mxu0 0.0
    %225 = vmatmul.mubr.f32.gmra.mrb[0].mxu0 %v113
    %v226 = vpop.f32.mrb[0].mxu0
    %v227 = vadd.f32 %v61, %v226
    %v228 = vpop.f32.mrb[0].mxu0
    %v229 = vadd.f32 %v65, %v228
    %230 = vmatprep.mubr.f32.mxu0 0.0
    %231 = vmatmul.mubr.f32.gmra.mrb[0].mxu0 %v116
    %v232 = vpop.f32.mrb[0].mxu0
    %v233 = vadd.f32 %v61, %v232
    %v234 = vpop.f32.mrb[0].mxu0
    %v235 = vadd.f32 %v65, %v234
    %236 = vmatprep.mubr.f32.mxu0 0.0
    %237 = vmatmul.mubr.f32.gmra.mrb[0].mxu0 %v119
    %v238 = vpop.f32.mrb[0].mxu0
    %v239 = vadd.f32 %v61, %v238
    %v240 = vpop.f32.mrb[0].mxu0
    %v241 = vadd.f32 %v65, %v240
    %242 = vdwg.mxu0
    %243 = vmatprep.subr.mxu0 %v128
    %244 = vmatpush1.msra.mxu0 %v126
    %245 = vmatprep.subr.mxu0 0.0
    %246 = vmatpush1.msra.mxu0 0.0
    %247 = vmatprep.subr.mxu0 0.0
    %248 = vmatpush1.msra.mxu0 0.0
    %249 = vmatprep.subr.mxu0 0.0
    %250 = vmatpush1.msra.mxu0 0.0
    %251 = vmatprep.subr.mxu0 0.0
    %252 = vmatpush1.msra.mxu0 0.0
    %253 = vmatprep.subr.mxu0 0.0
    %254 = vmatpush1.msra.mxu0 0.0
    %255 = vmatprep.subr.mxu0 0.0
    %256 = vmatpush1.msra.mxu0 0.0
    %257 = vmatprep.subr.mxu0 0.0
    %258 = vmatpush1.msra.mxu0 0.0
    %259 = vmatprep.subr.mxu0 0.0
    %260 = vmatpush1.msra.mxu0 0.0
    %261 = vmatprep.subr.mxu0 0.0
    %262 = vmatpush1.msra.mxu0 0.0
    %263 = vmatprep.subr.mxu0 0.0
    %264 = vmatpush1.msra.mxu0 0.0
    %265 = vmatprep.subr.mxu0 0.0
    %266 = vmatpush1.msra.mxu0 0.0
    %267 = vmatprep.subr.mxu0 0.0
    %268 = vmatpush1.msra.mxu0 0.0
    %269 = vmatprep.subr.mxu0 0.0
    %270 = vmatpush1.msra.mxu0 0.0
    %271 = vmatprep.subr.mxu0 0.0
    %272 = vmatpush1.msra.mxu0 0.0
    %273 = vmatprep.subr.mxu0 0.0
    %274 = vmatpush1.msra.mxu0 0.0
    %275 = vmatprep.subr.mxu0 0.0
    %276 = vmatpush1.msra.mxu0 0.0
    %277 = vmatprep.subr.mxu0 0.0
    %278 = vmatpush1.msra.mxu0 0.0
    %279 = vmatprep.subr.mxu0 0.0
    %280 = vmatpush1.msra.mxu0 0.0
    %281 = vmatprep.subr.mxu0 0.0
    %282 = vmatpush1.msra.mxu0 0.0
    %283 = vmatprep.subr.mxu0 0.0
    %284 = vmatpush1.msra.mxu0 0.0
    %285 = vmatprep.subr.mxu0 0.0
    %286 = vmatpush1.msra.mxu0 0.0
    %287 = vmatprep.subr.mxu0 0.0
    %288 = vmatpush1.msra.mxu0 0.0
    %289 = vmatprep.subr.mxu0 0.0
    %290 = vmatpush1.msra.mxu0 0.0
    %291 = vmatprep.subr.mxu0 0.0
    %292 = vmatpush1.msra.mxu0 0.0
    %293 = vmatprep.subr.mxu0 0.0
    %294 = vmatpush1.msra.mxu0 0.0
    %295 = vmatprep.subr.mxu0 0.0
    %296 = vmatpush1.msra.mxu0 0.0
    %297 = vmatprep.subr.mxu0 0.0
    %298 = vmatpush1.msra.mxu0 0.0
    %299 = vmatprep.subr.mxu0 0.0
    %300 = vmatpush1.msra.mxu0 0.0
    %301 = vmatprep.subr.mxu0 0.0
    %302 = vmatpush1.msra.mxu0 0.0
    %303 = vmatprep.subr.mxu0 0.0
    %304 = vmatpush1.msra.mxu0 0.0
    %305 = vmatprep.subr.mxu0 0.0
    %306 = vmatpush1.msra.mxu0 0.0
    %307 = vmatprep.mubr.f32.mxu0 0.0
    %308 = vmatmul.mubr.f32.gmra.mrb[0].mxu0 %v98
    %v309 = vpop.f32.mrb[0].mxu0
    %v310 = vadd.f32 %v69, %v309
    %v311 = vpop.f32.mrb[0].mxu0
    %v312 = vadd.f32 %v73, %v311
    %313 = vmatprep.mubr.f32.mxu0 0.0
    %314 = vmatmul.mubr.f32.gmra.mrb[0].mxu0 %v101
    %v315 = vpop.f32.mrb[0].mxu0
    %v316 = vadd.f32 %v69, %v315
    %v317 = vpop.f32.mrb[0].mxu0
    %v318 = vadd.f32 %v73, %v317
    %319 = vmatprep.mubr.f32.mxu0 0.0
    %320 = vmatmul.mubr.f32.gmra.mrb[0].mxu0 %v104
    %v321 = vpop.f32.mrb[0].mxu0
    %v322 = vadd.f32 %v69, %v321
    %v323 = vpop.f32.mrb[0].mxu0
    %v324 = vadd.f32 %v73, %v323
    %325 = vmatprep.mubr.f32.mxu0 0.0
    %326 = vmatmul.mubr.f32.gmra.mrb[0].mxu0 %v107
    %v327 = vpop.f32.mrb[0].mxu0
    %v328 = vadd.f32 %v69, %v327
    %v329 = vpop.f32.mrb[0].mxu0
    %v330 = vadd.f32 %v73, %v329
    %331 = vmatprep.mubr.f32.mxu0 0.0
    %332 = vmatmul.mubr.f32.gmra.mrb[0].mxu0 %v110
    %v333 = vpop.f32.mrb[0].mxu0
    %v334 = vadd.f32 %v69, %v333
    %v335 = vpop.f32.mrb[0].mxu0
    %v336 = vadd.f32 %v73, %v335
    %337 = vmatprep.mubr.f32.mxu0 0.0
    %338 = vmatmul.mubr.f32.gmra.mrb[0].mxu0 %v113
    %v339 = vpop.f32.mrb[0].mxu0
    %v340 = vadd.f32 %v69, %v339
    %v341 = vpop.f32.mrb[0].mxu0
    %v342 = vadd.f32 %v73, %v341
    %343 = vmatprep.mubr.f32.mxu0 0.0
    %344 = vmatmul.mubr.f32.gmra.mrb[0].mxu0 %v116
    %v345 = vpop.f32.mrb[0].mxu0
    %v346 = vadd.f32 %v69, %v345
    %v347 = vpop.f32.mrb[0].mxu0
    %v348 = vadd.f32 %v73, %v347
    %349 = vmatprep.mubr.f32.mxu0 0.0
    %350 = vmatmul.mubr.f32.gmra.mrb[0].mxu0 %v119
    %v351 = vpop.f32.mrb[0].mxu0
    %v352 = vadd.f32 %v69, %v351
    %v353 = vpop.f32.mrb[0].mxu0
    %v354 = vadd.f32 %v73, %v353
    %355 = vdwg.mxu0
    %356 = vst [vmem:[#allocation2] sm:$0xff] %v197
    %357 = vst [vmem:[#allocation2 + $0x8] sm:$0xff] %v199
    %358 = vst [vmem:[#allocation2 + $0x10] sm:$0xff] %v310
    %359 = vst [vmem:[#allocation2 + $0x18] sm:$0xff] %v312
    %360 = vst [vmem:[#allocation2 + $0x20] sm:$0xff] %v203
    %361 = vst [vmem:[#allocation2 + $0x28] sm:$0xff] %v205
    %362 = vst [vmem:[#allocation2 + $0x30] sm:$0xff] %v316
    %363 = vst [vmem:[#allocation2 + $0x38] sm:$0xff] %v318
    %364 = vst [vmem:[#allocation2 + $0x40] sm:$0xff] %v209
    %365 = vst [vmem:[#allocation2 + $0x48] sm:$0xff] %v211
    %366 = vst [vmem:[#allocation2 + $0x50] sm:$0xff] %v322
    %367 = vst [vmem:[#allocation2 + $0x58] sm:$0xff] %v324
    %368 = vst [vmem:[#allocation2 + $0x60] sm:$0xff] %v215
    %369 = vst [vmem:[#allocation2 + $0x68] sm:$0xff] %v217
    %370 = vst [vmem:[#allocation2 + $0x70] sm:$0xff] %v328
    %371 = vst [vmem:[#allocation2 + $0x78] sm:$0xff] %v330
    %372 = vst [vmem:[#allocation2 + $0x80] sm:$0xff] %v221
    %373 = vst [vmem:[#allocation2 + $0x88] sm:$0xff] %v223
    %374 = vst [vmem:[#allocation2 + $0x90] sm:$0xff] %v334
    %375 = vst [vmem:[#allocation2 + $0x98] sm:$0xff] %v336
    %376 = vst [vmem:[#allocation2 + $0xa0] sm:$0xff] %v227
    %377 = vst [vmem:[#allocation2 + $0xa8] sm:$0xff] %v229
    %378 = vst [vmem:[#allocation2 + $0xb0] sm:$0xff] %v340
    %379 = vst [vmem:[#allocation2 + $0xb8] sm:$0xff] %v342
    %380 = vst [vmem:[#allocation2 + $0xc0] sm:$0xff] %v233
    %381 = vst [vmem:[#allocation2 + $0xc8] sm:$0xff] %v235
    %382 = vst [vmem:[#allocation2 + $0xd0] sm:$0xff] %v346
    %383 = vst [vmem:[#allocation2 + $0xd8] sm:$0xff] %v348
    %384 = vst [vmem:[#allocation2 + $0xe0] sm:$0xff] %v239
    %385 = vst [vmem:[#allocation2 + $0xe8] sm:$0xff] %v241
    %386 = vst [vmem:[#allocation2 + $0xf0] sm:$0xff] %v352
    %387 = vst [vmem:[#allocation2 + $0xf8] sm:$0xff] %v354
    %v388 = vld [vmem:[#allocation2] sm:$0xff]
    %v389 = vld [vmem:[#allocation2 + $0x10] sm:$0xff]
    %v390 = vld [vmem:[#allocation2 + $0x18] sm:$0xff]
    %v391 = vxor.u32 %v388, 2147483648
    %v392 = vxor.u32 %v389, 2147483648
    %v393 = vmul.f32 %v391, 1.442695
    %v394 = vpow.pop %v393
    %v395 = vmul.f32 %v392, 1.442695
    %v396 = vpow.pop %v395
    %v397 = vadd.f32 %v394, 1.0
    %v398 = vadd.f32 %v396, 1.0
    %v399 = vrcp.pop %v397
    %v400 = vmul.f32 1.0, %v399
    %v401 = vrcp.pop %v398
    %v402 = vmul.f32 1.0, %v401
    %v403 = vtanh.pop %v390
    %v404 = vmul.f32 %v400, %v403
    %v405 = vtanh.pop %v404
    %v406 = vmul.f32 %v402, %v405
    %407 = vst [vmem:[#allocation3] sm:$0xff] %v406
    %s408 = smul.u32 8, 16
    %s409 = smul.u32 %s408, 4
    %s410 = sshll.u32 %s409, 4
    %411 = dma.done [#allocation5], %s410
    %s412 = smul.u32 1, 4
    %s413 = smul.addr %s412, 8
    %s414 = scalar_lea.vmem [#allocation2], %s413
    %v415 = vld [vmem:[%s414] sm:$0xff]
    %v416 = vld [vmem:[%s414 + $0x8] sm:$0xff]
    %v417 = vld [vmem:[%s414 + $0x10] sm:$0xff]
    %v418 = vld [vmem:[%s414 + $0x18] sm:$0xff]
    %v419 = vld [vmem:[#allocation4] sm:$0xff]
    %v420 = vld [vmem:[#allocation4 + $0x8] sm:$0xff]
    %v421 = vld [vmem:[#allocation4 + $0x10] sm:$0xff]
    %v422 = vld [vmem:[#allocation4 + $0x18] sm:$0xff]
    %v423 = vld [vmem:[#allocation4 + $0x20] sm:$0xff]
    %v424 = vld [vmem:[#allocation4 + $0x28] sm:$0xff]
    %v425 = vld [vmem:[#allocation4 + $0x30] sm:$0xff]
    %v426 = vld [vmem:[#allocation4 + $0x38] sm:$0xff]
    %v427 = vld [vmem:[#allocation4 + $0x40] sm:$0xff]
    %v428 = vld [vmem:[#allocation4 + $0x48] sm:$0xff]
    %v429 = vld [vmem:[#allocation4 + $0x50] sm:$0xff]
    %v430 = vld [vmem:[#allocation4 + $0x58] sm:$0xff]
    %v431 = vld [vmem:[#allocation4 + $0x60] sm:$0xff]
    %v432 = vld [vmem:[#allocation4 + $0x68] sm:$0xff]
    %v433 = vld [vmem:[#allocation4 + $0x70] sm:$0xff]
    %v434 = vld [vmem:[#allocation4 + $0x78] sm:$0xff]
    %v435 = vld [vmem:[#allocation4 + $0x80] sm:$0xff]
    %v436 = vld [vmem:[#allocation4 + $0x88] sm:$0xff]
    %v437 = vld [vmem:[#allocation4 + $0x90] sm:$0xff]
    %v438 = vld [vmem:[#allocation4 + $0x98] sm:$0xff]
    %v439 = vld [vmem:[#allocation4 + $0xa0] sm:$0xff]
    %v440 = vld [vmem:[#allocation4 + $0xa8] sm:$0xff]
    %v441 = vld [vmem:[#allocation4 + $0xb0] sm:$0xff]
    %v442 = vld [vmem:[#allocation4 + $0xb8] sm:$0xff]
    %v443 = vld [vmem:[#allocation4 + $0xc0] sm:$0xff]
    %v444 = vld [vmem:[#allocation4 + $0xc8] sm:$0xff]
    %v445 = vld [vmem:[#allocation4 + $0xd0] sm:$0xff]
    %v446 = vld [vmem:[#allocation4 + $0xd8] sm:$0xff]
    %v447 = vld [vmem:[#allocation4 + $0xe0] sm:$0xff]
    %v448 = vld [vmem:[#allocation4 + $0xe8] sm:$0xff]
    %v449 = vld [vmem:[#allocation4 + $0xf0] sm:$0xff]
    %v450 = vld [vmem:[#allocation4 + $0xf8] sm:$0xff]
    %v451 = vld [vmem:[#allocation4 + $0x100] sm:$0xff]
    %v452 = vld [vmem:[#allocation4 + $0x108] sm:$0xff]
    %v453 = vld [vmem:[#allocation4 + $0x110] sm:$0xff]
    %v454 = vld [vmem:[#allocation4 + $0x118] sm:$0xff]
    %v455 = vld [vmem:[#allocation4 + $0x120] sm:$0xff]
    %v456 = vld [vmem:[#allocation4 + $0x128] sm:$0xff]
    %v457 = vld [vmem:[#allocation4 + $0x130] sm:$0xff]
    %v458 = vld [vmem:[#allocation4 + $0x138] sm:$0xff]
    %v459 = vld [vmem:[#allocation4 + $0x140] sm:$0xff]
    %v460 = vld [vmem:[#allocation4 + $0x148] sm:$0xff]
    %v461 = vld [vmem:[#allocation4 + $0x150] sm:$0xff]
    %v462 = vld [vmem:[#allocation4 + $0x158] sm:$0xff]
    %v463 = vld [vmem:[#allocation4 + $0x160] sm:$0xff]
    %v464 = vld [vmem:[#allocation4 + $0x168] sm:$0xff]
    %v465 = vld [vmem:[#allocation4 + $0x170] sm:$0xff]
    %v466 = vld [vmem:[#allocation4 + $0x178] sm:$0xff]
    %v467 = vld [vmem:[#allocation4 + $0x180] sm:$0xff]
    %v468 = vld [vmem:[#allocation4 + $0x188] sm:$0xff]
    %v469 = vld [vmem:[#allocation4 + $0x190] sm:$0xff]
    %v470 = vld [vmem:[#allocation4 + $0x198] sm:$0xff]
    %v471 = vld [vmem:[#allocation4 + $0x1a0] sm:$0xff]
    %v472 = vld [vmem:[#allocation4 + $0x1a8] sm:$0xff]
    %v473 = vld [vmem:[#allocation4 + $0x1b0] sm:$0xff]
    %v474 = vld [vmem:[#allocation4 + $0x1b8] sm:$0xff]
    %v475 = vld [vmem:[#allocation4 + $0x1c0] sm:$0xff]
    %v476 = vld [vmem:[#allocation4 + $0x1c8] sm:$0xff]
    %v477 = vld [vmem:[#allocation4 + $0x1d0] sm:$0xff]
    %v478 = vld [vmem:[#allocation4 + $0x1d8] sm:$0xff]
    %v479 = vld [vmem:[#allocation4 + $0x1e0] sm:$0xff]
    %v480 = vld [vmem:[#allocation4 + $0x1e8] sm:$0xff]
    %v481 = vld [vmem:[#allocation4 + $0x1f0] sm:$0xff]
    %v482 = vld [vmem:[#allocation4 + $0x1f8] sm:$0xff]
    %483 = vmatprep.subr.mxu0 %v420
    %484 = vmatpush1.msra.mxu0 %v419
    %485 = vmatprep.subr.mxu0 %v424
    %486 = vmatpush1.msra.mxu0 %v423
    %487 = vmatprep.subr.mxu0 %v428
    %488 = vmatpush1.msra.mxu0 %v427
    %489 = vmatprep.subr.mxu0 %v432
    %490 = vmatpush1.msra.mxu0 %v431
    %491 = vmatprep.subr.mxu0 %v436
    %492 = vmatpush1.msra.mxu0 %v435
    %493 = vmatprep.subr.mxu0 %v440
    %494 = vmatpush1.msra.mxu0 %v439
    %495 = vmatprep.subr.mxu0 %v444
    %496 = vmatpush1.msra.mxu0 %v443
    %497 = vmatprep.subr.mxu0 %v448
    %498 = vmatpush1.msra.mxu0 %v447
    %499 = vmatprep.subr.mxu0 %v452
    %500 = vmatpush1.msra.mxu0 %v451
    %501 = vmatprep.subr.mxu0 %v456
    %502 = vmatpush1.msra.mxu0 %v455
    %503 = vmatprep.subr.mxu0 %v460
    %504 = vmatpush1.msra.mxu0 %v459
    %505 = vmatprep.subr.mxu0 %v464
    %506 = vmatpush1.msra.mxu0 %v463
    %507 = vmatprep.subr.mxu0 %v468
    %508 = vmatpush1.msra.mxu0 %v467
    %509 = vmatprep.subr.mxu0 %v472
    %510 = vmatpush1.msra.mxu0 %v471
    %511 = vmatprep.subr.mxu0 %v476
    %512 = vmatpush1.msra.mxu0 %v475
    %513 = vmatprep.subr.mxu0 %v480
    %514 = vmatpush1.msra.mxu0 %v479
    %515 = vmatprep.subr.mxu0 0.0
    %516 = vmatpush1.msra.mxu0 0.0
    %517 = vmatprep.subr.mxu0 0.0
    %518 = vmatpush1.msra.mxu0 0.0
    %519 = vmatprep.subr.mxu0 0.0
    %520 = vmatpush1.msra.mxu0 0.0
    %521 = vmatprep.subr.mxu0 0.0
    %522 = vmatpush1.msra.mxu0 0.0
    %523 = vmatprep.subr.mxu0 0.0
    %524 = vmatpush1.msra.mxu0 0.0
    %525 = vmatprep.subr.mxu0 0.0
    %526 = vmatpush1.msra.mxu0 0.0
    %527 = vmatprep.subr.mxu0 0.0
    %528 = vmatpush1.msra.mxu0 0.0
    %529 = vmatprep.subr.mxu0 0.0
    %530 = vmatpush1.msra.mxu0 0.0
    %531 = vmatprep.subr.mxu0 0.0
    %532 = vmatpush1.msra.mxu0 0.0
    %533 = vmatprep.subr.mxu0 0.0
    %534 = vmatpush1.msra.mxu0 0.0
    %535 = vmatprep.subr.mxu0 0.0
    %536 = vmatpush1.msra.mxu0 0.0
    %537 = vmatprep.subr.mxu0 0.0
    %538 = vmatpush1.msra.mxu0 0.0
    %539 = vmatprep.subr.mxu0 0.0
    %540 = vmatpush1.msra.mxu0 0.0
    %541 = vmatprep.subr.mxu0 0.0
    %542 = vmatpush1.msra.mxu0 0.0
    %543 = vmatprep.subr.mxu0 0.0
    %544 = vmatpush1.msra.mxu0 0.0
    %545 = vmatprep.subr.mxu0 0.0
    %546 = vmatpush1.msra.mxu0 0.0
    %547 = vmatprep.mubr.f32.mxu0 0.0
    %548 = vmatmul.mubr.f32.gmra.mrb[0].mxu0 %v406
    %v549 = vpop.f32.mrb[0].mxu0
    %v550 = vadd.f32 0.0, %v549
    %v551 = vpop.f32.mrb[0].mxu0
    %v552 = vadd.f32 0.0, %v551
    %553 = vdwg.mxu0
    %554 = vmatprep.subr.mxu0 %v422
    %555 = vmatpush1.msra.mxu0 %v421
    %556 = vmatprep.subr.mxu0 %v426
    %557 = vmatpush1.msra.mxu0 %v425
    %558 = vmatprep.subr.mxu0 %v430
    %559 = vmatpush1.msra.mxu0 %v429
    %560 = vmatprep.subr.mxu0 %v434
    %561 = vmatpush1.msra.mxu0 %v433
    %562 = vmatprep.subr.mxu0 %v438
    %563 = vmatpush1.msra.mxu0 %v437
    %564 = vmatprep.subr.mxu0 %v442
    %565 = vmatpush1.msra.mxu0 %v441
    %566 = vmatprep.subr.mxu0 %v446
    %567 = vmatpush1.msra.mxu0 %v445
    %568 = vmatprep.subr.mxu0 %v450
    %569 = vmatpush1.msra.mxu0 %v449
    %570 = vmatprep.subr.mxu0 %v454
    %571 = vmatpush1.msra.mxu0 %v453
    %572 = vmatprep.subr.mxu0 %v458
    %573 = vmatpush1.msra.mxu0 %v457
    %574 = vmatprep.subr.mxu0 %v462
    %575 = vmatpush1.msra.mxu0 %v461
    %576 = vmatprep.subr.mxu0 %v466
    %577 = vmatpush1.msra.mxu0 %v465
    %578 = vmatprep.subr.mxu0 %v470
    %579 = vmatpush1.msra.mxu0 %v469
    %580 = vmatprep.subr.mxu0 %v474
    %581 = vmatpush1.msra.mxu0 %v473
    %582 = vmatprep.subr.mxu0 %v478
    %583 = vmatpush1.msra.mxu0 %v477
    %584 = vmatprep.subr.mxu0 %v482
    %585 = vmatpush1.msra.mxu0 %v481
    %586 = vmatprep.subr.mxu0 0.0
    %587 = vmatpush1.msra.mxu0 0.0
    %588 = vmatprep.subr.mxu0 0.0
    %589 = vmatpush1.msra.mxu0 0.0
    %590 = vmatprep.subr.mxu0 0.0
    %591 = vmatpush1.msra.mxu0 0.0
    %592 = vmatprep.subr.mxu0 0.0
    %593 = vmatpush1.msra.mxu0 0.0
    %594 = vmatprep.subr.mxu0 0.0
    %595 = vmatpush1.msra.mxu0 0.0
    %596 = vmatprep.subr.mxu0 0.0
    %597 = vmatpush1.msra.mxu0 0.0
    %598 = vmatprep.subr.mxu0 0.0
    %599 = vmatpush1.msra.mxu0 0.0
    %600 = vmatprep.subr.mxu0 0.0
    %601 = vmatpush1.msra.mxu0 0.0
    %602 = vmatprep.subr.mxu0 0.0
    %603 = vmatpush1.msra.mxu0 0.0
    %604 = vmatprep.subr.mxu0 0.0
    %605 = vmatpush1.msra.mxu0 0.0
    %606 = vmatprep.subr.mxu0 0.0
    %607 = vmatpush1.msra.mxu0 0.0
    %608 = vmatprep.subr.mxu0 0.0
    %609 = vmatpush1.msra.mxu0 0.0
    %610 = vmatprep.subr.mxu0 0.0
    %611 = vmatpush1.msra.mxu0 0.0
    %612 = vmatprep.subr.mxu0 0.0
    %613 = vmatpush1.msra.mxu0 0.0
    %614 = vmatprep.subr.mxu0 0.0
    %615 = vmatpush1.msra.mxu0 0.0
    %616 = vmatprep.subr.mxu0 0.0
    %617 = vmatpush1.msra.mxu0 0.0
    %618 = vmatprep.mubr.f32.mxu0 0.0
    %619 = vmatmul.mubr.f32.gmra.mrb[0].mxu0 %v406
    %v620 = vpop.f32.mrb[0].mxu0
    %v621 = vadd.f32 0.0, %v620
    %v622 = vpop.f32.mrb[0].mxu0
    %v623 = vadd.f32 0.0, %v622
    %624 = vdwg.mxu0
    %v625 = vadd.f32 %v415, %v550
    %v626 = vadd.f32 %v416, %v552
    %v627 = vadd.f32 %v417, %v621
    %v628 = vadd.f32 %v418, %v623
    %v629 = vxor.u32 %v625, 2147483648
    %v630 = vxor.u32 %v626, 2147483648
    %v631 = vxor.u32 %v627, 2147483648
    %v632 = vmul.f32 %v629, 1.442695
    %v633 = vpow.pop %v632
    %v634 = vmul.f32 %v630, 1.442695
    %v635 = vpow.pop %v634
    %v636 = vmul.f32 %v631, 1.442695
    %v637 = vpow.pop %v636
    %v638 = vadd.f32 %v633, 1.0
    %v639 = vadd.f32 %v635, 1.0
    %v640 = vadd.f32 %v637, 1.0
    %v641 = vrcp.pop %v638
    %v642 = vmul.f32 1.0, %v641
    %v643 = vrcp.pop %v639
    %v644 = vmul.f32 1.0, %v643
    %v645 = vrcp.pop %v640
    %v646 = vmul.f32 1.0, %v645
    %v647 = vtanh.pop %v628
    %v648 = vmul.f32 %v644, %v404
    %v649 = vmul.f32 %v642, %v647
    %v650 = vadd.f32 %v648, %v649
    %v651 = vtanh.pop %v650
    %v652 = vmul.f32 %v646, %v651
    %s653 = scalar_lea.vmem [#allocation3], 8
    %654 = vst [vmem:[%s653] sm:$0xff] %v652
    %s655 = smul.u32 2, 4
    %s656 = smul.addr %s655, 8
    %s657 = scalar_lea.vmem [#allocation2], %s656
    %v658 = vld [vmem:[%s657] sm:$0xff]
    %v659 = vld [vmem:[%s657 + $0x8] sm:$0xff]
    %v660 = vld [vmem:[%s657 + $0x10] sm:$0xff]
    %v661 = vld [vmem:[%s657 + $0x18] sm:$0xff]
    %v662 = vld [vmem:[#allocation4] sm:$0xff]
    %v663 = vld [vmem:[#allocation4 + $0x8] sm:$0xff]
    %v664 = vld [vmem:[#allocation4 + $0x10] sm:$0xff]
    %v665 = vld [vmem:[#allocation4 + $0x18] sm:$0xff]
    %v666 = vld [vmem:[#allocation4 + $0x20] sm:$0xff]
    %v667 = vld [vmem:[#allocation4 + $0x28] sm:$0xff]
    %v668 = vld [vmem:[#allocation4 + $0x30] sm:$0xff]
    %v669 = vld [vmem:[#allocation4 + $0x38] sm:$0xff]
    %v670 = vld [vmem:[#allocation4 + $0x40] sm:$0xff]
    %v671 = vld [vmem:[#allocation4 + $0x48] sm:$0xff]
    %v672 = vld [vmem:[#allocation4 + $0x50] sm:$0xff]
    %v673 = vld [vmem:[#allocation4 + $0x58] sm:$0xff]
    %v674 = vld [vmem:[#allocation4 + $0x60] sm:$0xff]
    %v675 = vld [vmem:[#allocation4 + $0x68] sm:$0xff]
    %v676 = vld [vmem:[#allocation4 + $0x70] sm:$0xff]
    %v677 = vld [vmem:[#allocation4 + $0x78] sm:$0xff]
    %v678 = vld [vmem:[#allocation4 + $0x80] sm:$0xff]
    %v679 = vld [vmem:[#allocation4 + $0x88] sm:$0xff]
    %v680 = vld [vmem:[#allocation4 + $0x90] sm:$0xff]
    %v681 = vld [vmem:[#allocation4 + $0x98] sm:$0xff]
    %v682 = vld [vmem:[#allocation4 + $0xa0] sm:$0xff]
    %v683 = vld [vmem:[#allocation4 + $0xa8] sm:$0xff]
    %v684 = vld [vmem:[#allocation4 + $0xb0] sm:$0xff]
    %v685 = vld [vmem:[#allocation4 + $0xb8] sm:$0xff]
    %v686 = vld [vmem:[#allocation4 + $0xc0] sm:$0xff]
    %v687 = vld [vmem:[#allocation4 + $0xc8] sm:$0xff]
    %v688 = vld [vmem:[#allocation4 + $0xd0] sm:$0xff]
    %v689 = vld [vmem:[#allocation4 + $0xd8] sm:$0xff]
    %v690 = vld [vmem:[#allocation4 + $0xe0] sm:$0xff]
    %v691 = vld [vmem:[#allocation4 + $0xe8] sm:$0xff]
    %v692 = vld [vmem:[#allocation4 + $0xf0] sm:$0xff]
    %v693 = vld [vmem:[#allocation4 + $0xf8] sm:$0xff]
    %v694 = vld [vmem:[#allocation4 + $0x100] sm:$0xff]
    %v695 = vld [vmem:[#allocation4 + $0x108] sm:$0xff]
    %v696 = vld [vmem:[#allocation4 + $0x110] sm:$0xff]
    %v697 = vld [vmem:[#allocation4 + $0x118] sm:$0xff]
    %v698 = vld [vmem:[#allocation4 + $0x120] sm:$0xff]
    %v699 = vld [vmem:[#allocation4 + $0x128] sm:$0xff]
    %v700 = vld [vmem:[#allocation4 + $0x130] sm:$0xff]
    %v701 = vld [vmem:[#allocation4 + $0x138] sm:$0xff]
    %v702 = vld [vmem:[#allocation4 + $0x140] sm:$0xff]
    %v703 = vld [vmem:[#allocation4 + $0x148] sm:$0xff]
    %v704 = vld [vmem:[#allocation4 + $0x150] sm:$0xff]
    %v705 = vld [vmem:[#allocation4 + $0x158] sm:$0xff]
    %v706 = vld [vmem:[#allocation4 + $0x160] sm:$0xff]
    %v707 = vld [vmem:[#allocation4 + $0x168] sm:$0xff]
    %v708 = vld [vmem:[#allocation4 + $0x170] sm:$0xff]
    %v709 = vld [vmem:[#allocation4 + $0x178] sm:$0xff]
    %v710 = vld [vmem:[#allocation4 + $0x180] sm:$0xff]
    %v711 = vld [vmem:[#allocation4 + $0x188] sm:$0xff]
    %v712 = vld [vmem:[#allocation4 + $0x190] sm:$0xff]
    %v713 = vld [vmem:[#allocation4 + $0x198] sm:$0xff]
    %v714 = vld [vmem:[#allocation4 + $0x1a0] sm:$0xff]
    %v715 = vld [vmem:[#allocation4 + $0x1a8] sm:$0xff]
    %v716 = vld [vmem:[#allocation4 + $0x1b0] sm:$0xff]
    %v717 = vld [vmem:[#allocation4 + $0x1b8] sm:$0xff]
    %v718 = vld [vmem:[#allocation4 + $0x1c0] sm:$0xff]
    %v719 = vld [vmem:[#allocation4 + $0x1c8] sm:$0xff]
    %v720 = vld [vmem:[#allocation4 + $0x1d0] sm:$0xff]
    %v721 = vld [vmem:[#allocation4 + $0x1d8] sm:$0xff]
    %v722 = vld [vmem:[#allocation4 + $0x1e0] sm:$0xff]
    %v723 = vld [vmem:[#allocation4 + $0x1e8] sm:$0xff]
    %v724 = vld [vmem:[#allocation4 + $0x1f0] sm:$0xff]
    %v725 = vld [vmem:[#allocation4 + $0x1f8] sm:$0xff]
    %726 = vmatprep.subr.mxu0 %v663
    %727 = vmatpush1.msra.mxu0 %v662
    %728 = vmatprep.subr.mxu0 %v667
    %729 = vmatpush1.msra.mxu0 %v666
    %730 = vmatprep.subr.mxu0 %v671
    %731 = vmatpush1.msra.mxu0 %v670
    %732 = vmatprep.subr.mxu0 %v675
    %733 = vmatpush1.msra.mxu0 %v674
    %734 = vmatprep.subr.mxu0 %v679
    %735 = vmatpush1.msra.mxu0 %v678
    %736 = vmatprep.subr.mxu0 %v683
    %737 = vmatpush1.msra.mxu0 %v682
    %738 = vmatprep.subr.mxu0 %v687
    %739 = vmatpush1.msra.mxu0 %v686
    %740 = vmatprep.subr.mxu0 %v691
    %741 = vmatpush1.msra.mxu0 %v690
    %742 = vmatprep.subr.mxu0 %v695
    %743 = vmatpush1.msra.mxu0 %v694
    %744 = vmatprep.subr.mxu0 %v699
    %745 = vmatpush1.msra.mxu0 %v698
    %746 = vmatprep.subr.mxu0 %v703
    %747 = vmatpush1.msra.mxu0 %v702
    %748 = vmatprep.subr.mxu0 %v707
    %749 = vmatpush1.msra.mxu0 %v706
    %750 = vmatprep.subr.mxu0 %v711
    %751 = vmatpush1.msra.mxu0 %v710
    %752 = vmatprep.subr.mxu0 %v715
    %753 = vmatpush1.msra.mxu0 %v714
    %754 = vmatprep.subr.mxu0 %v719
    %755 = vmatpush1.msra.mxu0 %v718
    %756 = vmatprep.subr.mxu0 %v723
    %757 = vmatpush1.msra.mxu0 %v722
    %758 = vmatprep.subr.mxu0 0.0
    %759 = vmatpush1.msra.mxu0 0.0
    %760 = vmatprep.subr.mxu0 0.0
    %761 = vmatpush1.msra.mxu0 0.0
    %762 = vmatprep.subr.mxu0 0.0
    %763 = vmatpush1.msra.mxu0 0.0
    %764 = vmatprep.subr.mxu0 0.0
    %765 = vmatpush1.msra.mxu0 0.0
    %766 = vmatprep.subr.mxu0 0.0
    %767 = vmatpush1.msra.mxu0 0.0
    %768 = vmatprep.subr.mxu0 0.0
    %769 = vmatpush1.msra.mxu0 0.0
    %770 = vmatprep.subr.mxu0 0.0
    %771 = vmatpush1.msra.mxu0 0.0
    %772 = vmatprep.subr.mxu0 0.0
    %773 = vmatpush1.msra.mxu0 0.0
    %774 = vmatprep.subr.mxu0 0.0
    %775 = vmatpush1.msra.mxu0 0.0
    %776 = vmatprep.subr.mxu0 0.0
    %777 = vmatpush1.msra.mxu0 0.0
    %778 = vmatprep.subr.mxu0 0.0
    %779 = vmatpush1.msra.mxu0 0.0
    %780 = vmatprep.subr.mxu0 0.0
    %781 = vmatpush1.msra.mxu0 0.0
    %782 = vmatprep.subr.mxu0 0.0
    %783 = vmatpush1.msra.mxu0 0.0
    %784 = vmatprep.subr.mxu0 0.0
    %785 = vmatpush1.msra.mxu0 0.0
    %786 = vmatprep.subr.mxu0 0.0
    %787 = vmatpush1.msra.mxu0 0.0
    %788 = vmatprep.subr.mxu0 0.0
    %789 = vmatpush1.msra.mxu0 0.0
    %790 = vmatprep.mubr.f32.mxu0 0.0
    %791 = vmatmul.mubr.f32.gmra.mrb[0].mxu0 %v652
    %v792 = vpop.f32.mrb[0].mxu0
    %v793 = vadd.f32 0.0, %v792
    %v794 = vpop.f32.mrb[0].mxu0
    %v795 = vadd.f32 0.0, %v794
    %796 = vdwg.mxu0
    %797 = vmatprep.subr.mxu0 %v665
    %798 = vmatpush1.msra.mxu0 %v664
    %799 = vmatprep.subr.mxu0 %v669
    %800 = vmatpush1.msra.mxu0 %v668
    %801 = vmatprep.subr.mxu0 %v673
    %802 = vmatpush1.msra.mxu0 %v672
    %803 = vmatprep.subr.mxu0 %v677
    %804 = vmatpush1.msra.mxu0 %v676
    %805 = vmatprep.subr.mxu0 %v681
    %806 = vmatpush1.msra.mxu0 %v680
    %807 = vmatprep.subr.mxu0 %v685
    %808 = vmatpush1.msra.mxu0 %v684
    %809 = vmatprep.subr.mxu0 %v689
    %810 = vmatpush1.msra.mxu0 %v688
    %811 = vmatprep.subr.mxu0 %v693
    %812 = vmatpush1.msra.mxu0 %v692
    %813 = vmatprep.subr.mxu0 %v697
    %814 = vmatpush1.msra.mxu0 %v696
    %815 = vmatprep.subr.mxu0 %v701
    %816 = vmatpush1.msra.mxu0 %v700
    %817 = vmatprep.subr.mxu0 %v705
    %818 = vmatpush1.msra.mxu0 %v704
    %819 = vmatprep.subr.mxu0 %v709
    %820 = vmatpush1.msra.mxu0 %v708
    %821 = vmatprep.subr.mxu0 %v713
    %822 = vmatpush1.msra.mxu0 %v712
    %823 = vmatprep.subr.mxu0 %v717
    %824 = vmatpush1.msra.mxu0 %v716
    %825 = vmatprep.subr.mxu0 %v721
    %826 = vmatpush1.msra.mxu0 %v720
    %827 = vmatprep.subr.mxu0 %v725
    %828 = vmatpush1.msra.mxu0 %v724
    %829 = vmatprep.subr.mxu0 0.0
    %830 = vmatpush1.msra.mxu0 0.0
    %831 = vmatprep.subr.mxu0 0.0
    %832 = vmatpush1.msra.mxu0 0.0
    %833 = vmatprep.subr.mxu0 0.0
    %834 = vmatpush1.msra.mxu0 0.0
    %835 = vmatprep.subr.mxu0 0.0
    %836 = vmatpush1.msra.mxu0 0.0
    %837 = vmatprep.subr.mxu0 0.0
    %838 = vmatpush1.msra.mxu0 0.0
    %839 = vmatprep.subr.mxu0 0.0
    %840 = vmatpush1.msra.mxu0 0.0
    %841 = vmatprep.subr.mxu0 0.0
    %842 = vmatpush1.msra.mxu0 0.0
    %843 = vmatprep.subr.mxu0 0.0
    %844 = vmatpush1.msra.mxu0 0.0
    %845 = vmatprep.subr.mxu0 0.0
    %846 = vmatpush1.msra.mxu0 0.0
    %847 = vmatprep.subr.mxu0 0.0
    %848 = vmatpush1.msra.mxu0 0.0
    %849 = vmatprep.subr.mxu0 0.0
    %850 = vmatpush1.msra.mxu0 0.0
    %851 = vmatprep.subr.mxu0 0.0
    %852 = vmatpush1.msra.mxu0 0.0
    %853 = vmatprep.subr.mxu0 0.0
    %854 = vmatpush1.msra.mxu0 0.0
    %855 = vmatprep.subr.mxu0 0.0
    %856 = vmatpush1.msra.mxu0 0.0
    %857 = vmatprep.subr.mxu0 0.0
    %858 = vmatpush1.msra.mxu0 0.0
    %859 = vmatprep.subr.mxu0 0.0
    %860 = vmatpush1.msra.mxu0 0.0
    %861 = vmatprep.mubr.f32.mxu0 0.0
    %862 = vmatmul.mubr.f32.gmra.mrb[0].mxu0 %v652
    %v863 = vpop.f32.mrb[0].mxu0
    %v864 = vadd.f32 0.0, %v863
    %v865 = vpop.f32.mrb[0].mxu0
    %v866 = vadd.f32 0.0, %v865
    %867 = vdwg.mxu0
    %v868 = vadd.f32 %v658, %v793
    %v869 = vadd.f32 %v659, %v795
    %v870 = vadd.f32 %v660, %v864
    %v871 = vadd.f32 %v661, %v866
    %v872 = vxor.u32 %v868, 2147483648
    %v873 = vxor.u32 %v869, 2147483648
    %v874 = vxor.u32 %v870, 2147483648
    %v875 = vmul.f32 %v872, 1.442695
    %v876 = vpow.pop %v875
    %v877 = vmul.f32 %v873, 1.442695
    %v878 = vpow.pop %v877
    %v879 = vmul.f32 %v874, 1.442695
    %v880 = vpow.pop %v879
    %v881 = vadd.f32 %v876, 1.0
    %v882 = vadd.f32 %v878, 1.0
    %v883 = vadd.f32 %v880, 1.0
    %v884 = vrcp.pop %v881
    %v885 = vmul.f32 1.0, %v884
    %v886 = vrcp.pop %v882
    %v887 = vmul.f32 1.0, %v886
    %v888 = vrcp.pop %v883
    %v889 = vmul.f32 1.0, %v888
    %v890 = vtanh.pop %v871
    %v891 = vmul.f32 %v887, %v650
    %v892 = vmul.f32 %v885, %v890
    %v893 = vadd.f32 %v891, %v892
    %v894 = vtanh.pop %v893
    %v895 = vmul.f32 %v889, %v894
    %s896 = scalar_lea.vmem [#allocation3], 16
    %897 = vst [vmem:[%s896] sm:$0xff] %v895
    %s898 = smul.u32 3, 4
    %s899 = smul.addr %s898, 8
    %s900 = scalar_lea.vmem [#allocation2], %s899
    %v901 = vld [vmem:[%s900] sm:$0xff]
    %v902 = vld [vmem:[%s900 + $0x8] sm:$0xff]
    %v903 = vld [vmem:[%s900 + $0x10] sm:$0xff]
    %v904 = vld [vmem:[%s900 + $0x18] sm:$0xff]
    %v905 = vld [vmem:[#allocation4] sm:$0xff]
    %v906 = vld [vmem:[#allocation4 + $0x8] sm:$0xff]
    %v907 = vld [vmem:[#allocation4 + $0x10] sm:$0xff]
    %v908 = vld [vmem:[#allocation4 + $0x18] sm:$0xff]
    %v909 = vld [vmem:[#allocation4 + $0x20] sm:$0xff]
    %v910 = vld [vmem:[#allocation4 + $0x28] sm:$0xff]
    %v911 = vld [vmem:[#allocation4 + $0x30] sm:$0xff]
    %v912 = vld [vmem:[#allocation4 + $0x38] sm:$0xff]
    %v913 = vld [vmem:[#allocation4 + $0x40] sm:$0xff]
    %v914 = vld [vmem:[#allocation4 + $0x48] sm:$0xff]
    %v915 = vld [vmem:[#allocation4 + $0x50] sm:$0xff]
    %v916 = vld [vmem:[#allocation4 + $0x58] sm:$0xff]
    %v917 = vld [vmem:[#allocation4 + $0x60] sm:$0xff]
    %v918 = vld [vmem:[#allocation4 + $0x68] sm:$0xff]
    %v919 = vld [vmem:[#allocation4 + $0x70] sm:$0xff]
    %v920 = vld [vmem:[#allocation4 + $0x78] sm:$0xff]
    %v921 = vld [vmem:[#allocation4 + $0x80] sm:$0xff]
    %v922 = vld [vmem:[#allocation4 + $0x88] sm:$0xff]
    %v923 = vld [vmem:[#allocation4 + $0x90] sm:$0xff]
    %v924 = vld [vmem:[#allocation4 + $0x98] sm:$0xff]
    %v925 = vld [vmem:[#allocation4 + $0xa0] sm:$0xff]
    %v926 = vld [vmem:[#allocation4 + $0xa8] sm:$0xff]
    %v927 = vld [vmem:[#allocation4 + $0xb0] sm:$0xff]
    %v928 = vld [vmem:[#allocation4 + $0xb8] sm:$0xff]
    %v929 = vld [vmem:[#allocation4 + $0xc0] sm:$0xff]
    %v930 = vld [vmem:[#allocation4 + $0xc8] sm:$0xff]
    %v931 = vld [vmem:[#allocation4 + $0xd0] sm:$0xff]
    %v932 = vld [vmem:[#allocation4 + $0xd8] sm:$0xff]
    %v933 = vld [vmem:[#allocation4 + $0xe0] sm:$0xff]
    %v934 = vld [vmem:[#allocation4 + $0xe8] sm:$0xff]
    %v935 = vld [vmem:[#allocation4 + $0xf0] sm:$0xff]
    %v936 = vld [vmem:[#allocation4 + $0xf8] sm:$0xff]
    %v937 = vld [vmem:[#allocation4 + $0x100] sm:$0xff]
    %v938 = vld [vmem:[#allocation4 + $0x108] sm:$0xff]
    %v939 = vld [vmem:[#allocation4 + $0x110] sm:$0xff]
    %v940 = vld [vmem:[#allocation4 + $0x118] sm:$0xff]
    %v941 = vld [vmem:[#allocation4 + $0x120] sm:$0xff]
    %v942 = vld [vmem:[#allocation4 + $0x128] sm:$0xff]
    %v943 = vld [vmem:[#allocation4 + $0x130] sm:$0xff]
    %v944 = vld [vmem:[#allocation4 + $0x138] sm:$0xff]
    %v945 = vld [vmem:[#allocation4 + $0x140] sm:$0xff]
    %v946 = vld [vmem:[#allocation4 + $0x148] sm:$0xff]
    %v947 = vld [vmem:[#allocation4 + $0x150] sm:$0xff]
    %v948 = vld [vmem:[#allocation4 + $0x158] sm:$0xff]
    %v949 = vld [vmem:[#allocation4 + $0x160] sm:$0xff]
    %v950 = vld [vmem:[#allocation4 + $0x168] sm:$0xff]
    %v951 = vld [vmem:[#allocation4 + $0x170] sm:$0xff]
    %v952 = vld [vmem:[#allocation4 + $0x178] sm:$0xff]
    %v953 = vld [vmem:[#allocation4 + $0x180] sm:$0xff]
    %v954 = vld [vmem:[#allocation4 + $0x188] sm:$0xff]
    %v955 = vld [vmem:[#allocation4 + $0x190] sm:$0xff]
    %v956 = vld [vmem:[#allocation4 + $0x198] sm:$0xff]
    %v957 = vld [vmem:[#allocation4 + $0x1a0] sm:$0xff]
    %v958 = vld [vmem:[#allocation4 + $0x1a8] sm:$0xff]
    %v959 = vld [vmem:[#allocation4 + $0x1b0] sm:$0xff]
    %v960 = vld [vmem:[#allocation4 + $0x1b8] sm:$0xff]
    %v961 = vld [vmem:[#allocation4 + $0x1c0] sm:$0xff]
    %v962 = vld [vmem:[#allocation4 + $0x1c8] sm:$0xff]
    %v963 = vld [vmem:[#allocation4 + $0x1d0] sm:$0xff]
    %v964 = vld [vmem:[#allocation4 + $0x1d8] sm:$0xff]
    %v965 = vld [vmem:[#allocation4 + $0x1e0] sm:$0xff]
    %v966 = vld [vmem:[#allocation4 + $0x1e8] sm:$0xff]
    %v967 = vld [vmem:[#allocation4 + $0x1f0] sm:$0xff]
    %v968 = vld [vmem:[#allocation4 + $0x1f8] sm:$0xff]
    %969 = vmatprep.subr.mxu0 %v906
    %970 = vmatpush1.msra.mxu0 %v905
    %971 = vmatprep.subr.mxu0 %v910
    %972 = vmatpush1.msra.mxu0 %v909
    %973 = vmatprep.subr.mxu0 %v914
    %974 = vmatpush1.msra.mxu0 %v913
    %975 = vmatprep.subr.mxu0 %v918
    %976 = vmatpush1.msra.mxu0 %v917
    %977 = vmatprep.subr.mxu0 %v922
    %978 = vmatpush1.msra.mxu0 %v921
    %979 = vmatprep.subr.mxu0 %v926
    %980 = vmatpush1.msra.mxu0 %v925
    %981 = vmatprep.subr.mxu0 %v930
    %982 = vmatpush1.msra.mxu0 %v929
    %983 = vmatprep.subr.mxu0 %v934
    %984 = vmatpush1.msra.mxu0 %v933
    %985 = vmatprep.subr.mxu0 %v938
    %986 = vmatpush1.msra.mxu0 %v937
    %987 = vmatprep.subr.mxu0 %v942
    %988 = vmatpush1.msra.mxu0 %v941
    %989 = vmatprep.subr.mxu0 %v946
    %990 = vmatpush1.msra.mxu0 %v945
    %991 = vmatprep.subr.mxu0 %v950
    %992 = vmatpush1.msra.mxu0 %v949
    %993 = vmatprep.subr.mxu0 %v954
    %994 = vmatpush1.msra.mxu0 %v953
    %995 = vmatprep.subr.mxu0 %v958
    %996 = vmatpush1.msra.mxu0 %v957
    %997 = vmatprep.subr.mxu0 %v962
    %998 = vmatpush1.msra.mxu0 %v961
    %999 = vmatprep.subr.mxu0 %v966
    %1000 = vmatpush1.msra.mxu0 %v965
    %1001 = vmatprep.subr.mxu0 0.0
    %1002 = vmatpush1.msra.mxu0 0.0
    %1003 = vmatprep.subr.mxu0 0.0
    %1004 = vmatpush1.msra.mxu0 0.0
    %1005 = vmatprep.subr.mxu0 0.0
    %1006 = vmatpush1.msra.mxu0 0.0
    %1007 = vmatprep.subr.mxu0 0.0
    %1008 = vmatpush1.msra.mxu0 0.0
    %1009 = vmatprep.subr.mxu0 0.0
    %1010 = vmatpush1.msra.mxu0 0.0
    %1011 = vmatprep.subr.mxu0 0.0
    %1012 = vmatpush1.msra.mxu0 0.0
    %1013 = vmatprep.subr.mxu0 0.0
    %1014 = vmatpush1.msra.mxu0 0.0
    %1015 = vmatprep.subr.mxu0 0.0
    %1016 = vmatpush1.msra.mxu0 0.0
    %1017 = vmatprep.subr.mxu0 0.0
    %1018 = vmatpush1.msra.mxu0 0.0
    %1019 = vmatprep.subr.mxu0 0.0
    %1020 = vmatpush1.msra.mxu0 0.0
    %1021 = vmatprep.subr.mxu0 0.0
    %1022 = vmatpush1.msra.mxu0 0.0
    %1023 = vmatprep.subr.mxu0 0.0
    %1024 = vmatpush1.msra.mxu0 0.0
    %1025 = vmatprep.subr.mxu0 0.0
    %1026 = vmatpush1.msra.mxu0 0.0
    %1027 = vmatprep.subr.mxu0 0.0
    %1028 = vmatpush1.msra.mxu0 0.0
    %1029 = vmatprep.subr.mxu0 0.0
    %1030 = vmatpush1.msra.mxu0 0.0
    %1031 = vmatprep.subr.mxu0 0.0
    %1032 = vmatpush1.msra.mxu0 0.0
    %1033 = vmatprep.mubr.f32.mxu0 0.0
    %1034 = vmatmul.mubr.f32.gmra.mrb[0].mxu0 %v895
    %v1035 = vpop.f32.mrb[0].mxu0
    %v1036 = vadd.f32 0.0, %v1035
    %v1037 = vpop.f32.mrb[0].mxu0
    %v1038 = vadd.f32 0.0, %v1037
    %1039 = vdwg.mxu0
    %1040 = vmatprep.subr.mxu0 %v908
    %1041 = vmatpush1.msra.mxu0 %v907
    %1042 = vmatprep.subr.mxu0 %v912
    %1043 = vmatpush1.msra.mxu0 %v911
    %1044 = vmatprep.subr.mxu0 %v916
    %1045 = vmatpush1.msra.mxu0 %v915
    %1046 = vmatprep.subr.mxu0 %v920
    %1047 = vmatpush1.msra.mxu0 %v919
    %1048 = vmatprep.subr.mxu0 %v924
    %1049 = vmatpush1.msra.mxu0 %v923
    %1050 = vmatprep.subr.mxu0 %v928
    %1051 = vmatpush1.msra.mxu0 %v927
    %1052 = vmatprep.subr.mxu0 %v932
    %1053 = vmatpush1.msra.mxu0 %v931
    %1054 = vmatprep.subr.mxu0 %v936
    %1055 = vmatpush1.msra.mxu0 %v935
    %1056 = vmatprep.subr.mxu0 %v940
    %1057 = vmatpush1.msra.mxu0 %v939
    %1058 = vmatprep.subr.mxu0 %v944
    %1059 = vmatpush1.msra.mxu0 %v943
    %1060 = vmatprep.subr.mxu0 %v948
    %1061 = vmatpush1.msra.mxu0 %v947
    %1062 = vmatprep.subr.mxu0 %v952
    %1063 = vmatpush1.msra.mxu0 %v951
    %1064 = vmatprep.subr.mxu0 %v956
    %1065 = vmatpush1.msra.mxu0 %v955
    %1066 = vmatprep.subr.mxu0 %v960
    %1067 = vmatpush1.msra.mxu0 %v959
    %1068 = vmatprep.subr.mxu0 %v964
    %1069 = vmatpush1.msra.mxu0 %v963
    %1070 = vmatprep.subr.mxu0 %v968
    %1071 = vmatpush1.msra.mxu0 %v967
    %1072 = vmatprep.subr.mxu0 0.0
    %1073 = vmatpush1.msra.mxu0 0.0
    %1074 = vmatprep.subr.mxu0 0.0
    %1075 = vmatpush1.msra.mxu0 0.0
    %1076 = vmatprep.subr.mxu0 0.0
    %1077 = vmatpush1.msra.mxu0 0.0
    %1078 = vmatprep.subr.mxu0 0.0
    %1079 = vmatpush1.msra.mxu0 0.0
    %1080 = vmatprep.subr.mxu0 0.0
    %1081 = vmatpush1.msra.mxu0 0.0
    %1082 = vmatprep.subr.mxu0 0.0
    %1083 = vmatpush1.msra.mxu0 0.0
    %1084 = vmatprep.subr.mxu0 0.0
    %1085 = vmatpush1.msra.mxu0 0.0
    %1086 = vmatprep.subr.mxu0 0.0
    %1087 = vmatpush1.msra.mxu0 0.0
    %1088 = vmatprep.subr.mxu0 0.0
    %1089 = vmatpush1.msra.mxu0 0.0
    %1090 = vmatprep.subr.mxu0 0.0
    %1091 = vmatpush1.msra.mxu0 0.0
    %1092 = vmatprep.subr.mxu0 0.0
    %1093 = vmatpush1.msra.mxu0 0.0
    %1094 = vmatprep.subr.mxu0 0.0
    %1095 = vmatpush1.msra.mxu0 0.0
    %1096 = vmatprep.subr.mxu0 0.0
    %1097 = vmatpush1.msra.mxu0 0.0
    %1098 = vmatprep.subr.mxu0 0.0
    %1099 = vmatpush1.msra.mxu0 0.0
    %1100 = vmatprep.subr.mxu0 0.0
    %1101 = vmatpush1.msra.mxu0 0.0
    %1102 = vmatprep.subr.mxu0 0.0
    %1103 = vmatpush1.msra.mxu0 0.0
    %1104 = vmatprep.mubr.f32.mxu0 0.0
    %1105 = vmatmul.mubr.f32.gmra.mrb[0].mxu0 %v895
    %v1106 = vpop.f32.mrb[0].mxu0
    %v1107 = vadd.f32 0.0, %v1106
    %v1108 = vpop.f32.mrb[0].mxu0
    %v1109 = vadd.f32 0.0, %v1108
    %1110 = vdwg.mxu0
    %v1111 = vadd.f32 %v901, %v1036
    %v1112 = vadd.f32 %v902, %v1038
    %v1113 = vadd.f32 %v903, %v1107
    %v1114 = vadd.f32 %v904, %v1109
    %v1115 = vxor.u32 %v1111, 2147483648
    %v1116 = vxor.u32 %v1112, 2147483648
    %v1117 = vxor.u32 %v1113, 2147483648
    %v1118 = vmul.f32 %v1115, 1.442695
    %v1119 = vpow.pop %v1118
    %v1120 = vmul.f32 %v1116, 1.442695
    %v1121 = vpow.pop %v1120
    %v1122 = vmul.f32 %v1117, 1.442695
    %v1123 = vpow.pop %v1122
    %v1124 = vadd.f32 %v1119, 1.0
    %v1125 = vadd.f32 %v1121, 1.0
    %v1126 = vadd.f32 %v1123, 1.0
    %v1127 = vrcp.pop %v1124
    %v1128 = vmul.f32 1.0, %v1127
    %v1129 = vrcp.pop %v1125
    %v1130 = vmul.f32 1.0, %v1129
    %v1131 = vrcp.pop %v1126
    %v1132 = vmul.f32 1.0, %v1131
    %v1133 = vtanh.pop %v1114
    %v1134 = vmul.f32 %v1130, %v893
    %v1135 = vmul.f32 %v1128, %v1133
    %v1136 = vadd.f32 %v1134, %v1135
    %v1137 = vtanh.pop %v1136
    %v1138 = vmul.f32 %v1132, %v1137
    %s1139 = scalar_lea.vmem [#allocation3], 24
    %1140 = vst [vmem:[%s1139] sm:$0xff] %v1138
    %s1141 = smul.u32 4, 4
    %s1142 = smul.addr %s1141, 8
    %s1143 = scalar_lea.vmem [#allocation2], %s1142
    %v1144 = vld [vmem:[%s1143] sm:$0xff]
    %v1145 = vld [vmem:[%s1143 + $0x8] sm:$0xff]
    %v1146 = vld [vmem:[%s1143 + $0x10] sm:$0xff]
    %v1147 = vld [vmem:[%s1143 + $0x18] sm:$0xff]
    %v1148 = vld [vmem:[#allocation4] sm:$0xff]
    %v1149 = vld [vmem:[#allocation4 + $0x8] sm:$0xff]
    %v1150 = vld [vmem:[#allocation4 + $0x10] sm:$0xff]
    %v1151 = vld [vmem:[#allocation4 + $0x18] sm:$0xff]
    %v1152 = vld [vmem:[#allocation4 + $0x20] sm:$0xff]
    %v1153 = vld [vmem:[#allocation4 + $0x28] sm:$0xff]
    %v1154 = vld [vmem:[#allocation4 + $0x30] sm:$0xff]
    %v1155 = vld [vmem:[#allocation4 + $0x38] sm:$0xff]
    %v1156 = vld [vmem:[#allocation4 + $0x40] sm:$0xff]
    %v1157 = vld [vmem:[#allocation4 + $0x48] sm:$0xff]
    %v1158 = vld [vmem:[#allocation4 + $0x50] sm:$0xff]
    %v1159 = vld [vmem:[#allocation4 + $0x58] sm:$0xff]
    %v1160 = vld [vmem:[#allocation4 + $0x60] sm:$0xff]
    %v1161 = vld [vmem:[#allocation4 + $0x68] sm:$0xff]
    %v1162 = vld [vmem:[#allocation4 + $0x70] sm:$0xff]
    %v1163 = vld [vmem:[#allocation4 + $0x78] sm:$0xff]
    %v1164 = vld [vmem:[#allocation4 + $0x80] sm:$0xff]
    %v1165 = vld [vmem:[#allocation4 + $0x88] sm:$0xff]
    %v1166 = vld [vmem:[#allocation4 + $0x90] sm:$0xff]
    %v1167 = vld [vmem:[#allocation4 + $0x98] sm:$0xff]
    %v1168 = vld [vmem:[#allocation4 + $0xa0] sm:$0xff]
    %v1169 = vld [vmem:[#allocation4 + $0xa8] sm:$0xff]
    %v1170 = vld [vmem:[#allocation4 + $0xb0] sm:$0xff]
    %v1171 = vld [vmem:[#allocation4 + $0xb8] sm:$0xff]
    %v1172 = vld [vmem:[#allocation4 + $0xc0] sm:$0xff]
    %v1173 = vld [vmem:[#allocation4 + $0xc8] sm:$0xff]
    %v1174 = vld [vmem:[#allocation4 + $0xd0] sm:$0xff]
    %v1175 = vld [vmem:[#allocation4 + $0xd8] sm:$0xff]
    %v1176 = vld [vmem:[#allocation4 + $0xe0] sm:$0xff]
    %v1177 = vld [vmem:[#allocation4 + $0xe8] sm:$0xff]
    %v1178 = vld [vmem:[#allocation4 + $0xf0] sm:$0xff]
    %v1179 = vld [vmem:[#allocation4 + $0xf8] sm:$0xff]
    %v1180 = vld [vmem:[#allocation4 + $0x100] sm:$0xff]
    %v1181 = vld [vmem:[#allocation4 + $0x108] sm:$0xff]
    %v1182 = vld [vmem:[#allocation4 + $0x110] sm:$0xff]
    %v1183 = vld [vmem:[#allocation4 + $0x118] sm:$0xff]
    %v1184 = vld [vmem:[#allocation4 + $0x120] sm:$0xff]
    %v1185 = vld [vmem:[#allocation4 + $0x128] sm:$0xff]
    %v1186 = vld [vmem:[#allocation4 + $0x130] sm:$0xff]
    %v1187 = vld [vmem:[#allocation4 + $0x138] sm:$0xff]
    %v1188 = vld [vmem:[#allocation4 + $0x140] sm:$0xff]
    %v1189 = vld [vmem:[#allocation4 + $0x148] sm:$0xff]
    %v1190 = vld [vmem:[#allocation4 + $0x150] sm:$0xff]
    %v1191 = vld [vmem:[#allocation4 + $0x158] sm:$0xff]
    %v1192 = vld [vmem:[#allocation4 + $0x160] sm:$0xff]
    %v1193 = vld [vmem:[#allocation4 + $0x168] sm:$0xff]
    %v1194 = vld [vmem:[#allocation4 + $0x170] sm:$0xff]
    %v1195 = vld [vmem:[#allocation4 + $0x178] sm:$0xff]
    %v1196 = vld [vmem:[#allocation4 + $0x180] sm:$0xff]
    %v1197 = vld [vmem:[#allocation4 + $0x188] sm:$0xff]
    %v1198 = vld [vmem:[#allocation4 + $0x190] sm:$0xff]
    %v1199 = vld [vmem:[#allocation4 + $0x198] sm:$0xff]
    %v1200 = vld [vmem:[#allocation4 + $0x1a0] sm:$0xff]
    %v1201 = vld [vmem:[#allocation4 + $0x1a8] sm:$0xff]
    %v1202 = vld [vmem:[#allocation4 + $0x1b0] sm:$0xff]
    %v1203 = vld [vmem:[#allocation4 + $0x1b8] sm:$0xff]
    %v1204 = vld [vmem:[#allocation4 + $0x1c0] sm:$0xff]
    %v1205 = vld [vmem:[#allocation4 + $0x1c8] sm:$0xff]
    %v1206 = vld [vmem:[#allocation4 + $0x1d0] sm:$0xff]
    %v1207 = vld [vmem:[#allocation4 + $0x1d8] sm:$0xff]
    %v1208 = vld [vmem:[#allocation4 + $0x1e0] sm:$0xff]
    %v1209 = vld [vmem:[#allocation4 + $0x1e8] sm:$0xff]
    %v1210 = vld [vmem:[#allocation4 + $0x1f0] sm:$0xff]
    %v1211 = vld [vmem:[#allocation4 + $0x1f8] sm:$0xff]
    %1212 = vmatprep.subr.mxu0 %v1149
    %1213 = vmatpush1.msra.mxu0 %v1148
    %1214 = vmatprep.subr.mxu0 %v1153
    %1215 = vmatpush1.msra.mxu0 %v1152
    %1216 = vmatprep.subr.mxu0 %v1157
    %1217 = vmatpush1.msra.mxu0 %v1156
    %1218 = vmatprep.subr.mxu0 %v1161
    %1219 = vmatpush1.msra.mxu0 %v1160
    %1220 = vmatprep.subr.mxu0 %v1165
    %1221 = vmatpush1.msra.mxu0 %v1164
    %1222 = vmatprep.subr.mxu0 %v1169
    %1223 = vmatpush1.msra.mxu0 %v1168
    %1224 = vmatprep.subr.mxu0 %v1173
    %1225 = vmatpush1.msra.mxu0 %v1172
    %1226 = vmatprep.subr.mxu0 %v1177
    %1227 = vmatpush1.msra.mxu0 %v1176
    %1228 = vmatprep.subr.mxu0 %v1181
    %1229 = vmatpush1.msra.mxu0 %v1180
    %1230 = vmatprep.subr.mxu0 %v1185
    %1231 = vmatpush1.msra.mxu0 %v1184
    %1232 = vmatprep.subr.mxu0 %v1189
    %1233 = vmatpush1.msra.mxu0 %v1188
    %1234 = vmatprep.subr.mxu0 %v1193
    %1235 = vmatpush1.msra.mxu0 %v1192
    %1236 = vmatprep.subr.mxu0 %v1197
    %1237 = vmatpush1.msra.mxu0 %v1196
    %1238 = vmatprep.subr.mxu0 %v1201
    %1239 = vmatpush1.msra.mxu0 %v1200
    %1240 = vmatprep.subr.mxu0 %v1205
    %1241 = vmatpush1.msra.mxu0 %v1204
    %1242 = vmatprep.subr.mxu0 %v1209
    %1243 = vmatpush1.msra.mxu0 %v1208
    %1244 = vmatprep.subr.mxu0 0.0
    %1245 = vmatpush1.msra.mxu0 0.0
    %1246 = vmatprep.subr.mxu0 0.0
    %1247 = vmatpush1.msra.mxu0 0.0
    %1248 = vmatprep.subr.mxu0 0.0
    %1249 = vmatpush1.msra.mxu0 0.0
    %1250 = vmatprep.subr.mxu0 0.0
    %1251 = vmatpush1.msra.mxu0 0.0
    %1252 = vmatprep.subr.mxu0 0.0
    %1253 = vmatpush1.msra.mxu0 0.0
    %1254 = vmatprep.subr.mxu0 0.0
    %1255 = vmatpush1.msra.mxu0 0.0
    %1256 = vmatprep.subr.mxu0 0.0
    %1257 = vmatpush1.msra.mxu0 0.0
    %1258 = vmatprep.subr.mxu0 0.0
    %1259 = vmatpush1.msra.mxu0 0.0
    %1260 = vmatprep.subr.mxu0 0.0
    %1261 = vmatpush1.msra.mxu0 0.0
    %1262 = vmatprep.subr.mxu0 0.0
    %1263 = vmatpush1.msra.mxu0 0.0
    %1264 = vmatprep.subr.mxu0 0.0
    %1265 = vmatpush1.msra.mxu0 0.0
    %1266 = vmatprep.subr.mxu0 0.0
    %1267 = vmatpush1.msra.mxu0 0.0
    %1268 = vmatprep.subr.mxu0 0.0
    %1269 = vmatpush1.msra.mxu0 0.0
    %1270 = vmatprep.subr.mxu0 0.0
    %1271 = vmatpush1.msra.mxu0 0.0
    %1272 = vmatprep.subr.mxu0 0.0
    %1273 = vmatpush1.msra.mxu0 0.0
    %1274 = vmatprep.subr.mxu0 0.0
    %1275 = vmatpush1.msra.mxu0 0.0
    %1276 = vmatprep.mubr.f32.mxu0 0.0
    %1277 = vmatmul.mubr.f32.gmra.mrb[0].mxu0 %v1138
    %v1278 = vpop.f32.mrb[0].mxu0
    %v1279 = vadd.f32 0.0, %v1278
    %v1280 = vpop.f32.mrb[0].mxu0
    %v1281 = vadd.f32 0.0, %v1280
    %1282 = vdwg.mxu0
    %1283 = vmatprep.subr.mxu0 %v1151
    %1284 = vmatpush1.msra.mxu0 %v1150
    %1285 = vmatprep.subr.mxu0 %v1155
    %1286 = vmatpush1.msra.mxu0 %v1154
    %1287 = vmatprep.subr.mxu0 %v1159
    %1288 = vmatpush1.msra.mxu0 %v1158
    %1289 = vmatprep.subr.mxu0 %v1163
    %1290 = vmatpush1.msra.mxu0 %v1162
    %1291 = vmatprep.subr.mxu0 %v1167
    %1292 = vmatpush1.msra.mxu0 %v1166
    %1293 = vmatprep.subr.mxu0 %v1171
    %1294 = vmatpush1.msra.mxu0 %v1170
    %1295 = vmatprep.subr.mxu0 %v1175
    %1296 = vmatpush1.msra.mxu0 %v1174
    %1297 = vmatprep.subr.mxu0 %v1179
    %1298 = vmatpush1.msra.mxu0 %v1178
    %1299 = vmatprep.subr.mxu0 %v1183
    %1300 = vmatpush1.msra.mxu0 %v1182
    %1301 = vmatprep.subr.mxu0 %v1187
    %1302 = vmatpush1.msra.mxu0 %v1186
    %1303 = vmatprep.subr.mxu0 %v1191
    %1304 = vmatpush1.msra.mxu0 %v1190
    %1305 = vmatprep.subr.mxu0 %v1195
    %1306 = vmatpush1.msra.mxu0 %v1194
    %1307 = vmatprep.subr.mxu0 %v1199
    %1308 = vmatpush1.msra.mxu0 %v1198
    %1309 = vmatprep.subr.mxu0 %v1203
    %1310 = vmatpush1.msra.mxu0 %v1202
    %1311 = vmatprep.subr.mxu0 %v1207
    %1312 = vmatpush1.msra.mxu0 %v1206
    %1313 = vmatprep.subr.mxu0 %v1211
    %1314 = vmatpush1.msra.mxu0 %v1210
    %1315 = vmatprep.subr.mxu0 0.0
    %1316 = vmatpush1.msra.mxu0 0.0
    %1317 = vmatprep.subr.mxu0 0.0
    %1318 = vmatpush1.msra.mxu0 0.0
    %1319 = vmatprep.subr.mxu0 0.0
    %1320 = vmatpush1.msra.mxu0 0.0
    %1321 = vmatprep.subr.mxu0 0.0
    %1322 = vmatpush1.msra.mxu0 0.0
    %1323 = vmatprep.subr.mxu0 0.0
    %1324 = vmatpush1.msra.mxu0 0.0
    %1325 = vmatprep.subr.mxu0 0.0
    %1326 = vmatpush1.msra.mxu0 0.0
    %1327 = vmatprep.subr.mxu0 0.0
    %1328 = vmatpush1.msra.mxu0 0.0
    %1329 = vmatprep.subr.mxu0 0.0
    %1330 = vmatpush1.msra.mxu0 0.0
    %1331 = vmatprep.subr.mxu0 0.0
    %1332 = vmatpush1.msra.mxu0 0.0
    %1333 = vmatprep.subr.mxu0 0.0
    %1334 = vmatpush1.msra.mxu0 0.0
    %1335 = vmatprep.subr.mxu0 0.0
    %1336 = vmatpush1.msra.mxu0 0.0
    %1337 = vmatprep.subr.mxu0 0.0
    %1338 = vmatpush1.msra.mxu0 0.0
    %1339 = vmatprep.subr.mxu0 0.0
    %1340 = vmatpush1.msra.mxu0 0.0
    %1341 = vmatprep.subr.mxu0 0.0
    %1342 = vmatpush1.msra.mxu0 0.0
    %1343 = vmatprep.subr.mxu0 0.0
    %1344 = vmatpush1.msra.mxu0 0.0
    %1345 = vmatprep.subr.mxu0 0.0
    %1346 = vmatpush1.msra.mxu0 0.0
    %1347 = vmatprep.mubr.f32.mxu0 0.0
    %1348 = vmatmul.mubr.f32.gmra.mrb[0].mxu0 %v1138
    %v1349 = vpop.f32.mrb[0].mxu0
    %v1350 = vadd.f32 0.0, %v1349
    %v1351 = vpop.f32.mrb[0].mxu0
    %v1352 = vadd.f32 0.0, %v1351
    %1353 = vdwg.mxu0
    %v1354 = vadd.f32 %v1144, %v1279
    %v1355 = vadd.f32 %v1145, %v1281
    %v1356 = vadd.f32 %v1146, %v1350
    %v1357 = vadd.f32 %v1147, %v1352
    %v1358 = vxor.u32 %v1354, 2147483648
    %v1359 = vxor.u32 %v1355, 2147483648
    %v1360 = vxor.u32 %v1356, 2147483648
    %v1361 = vmul.f32 %v1358, 1.442695
    %v1362 = vpow.pop %v1361
    %v1363 = vmul.f32 %v1359, 1.442695
    %v1364 = vpow.pop %v1363
    %v1365 = vmul.f32 %v1360, 1.442695
    %v1366 = vpow.pop %v1365
    %v1367 = vadd.f32 %v1362, 1.0
    %v1368 = vadd.f32 %v1364, 1.0
    %v1369 = vadd.f32 %v1366, 1.0
    %v1370 = vrcp.pop %v1367
    %v1371 = vmul.f32 1.0, %v1370
    %v1372 = vrcp.pop %v1368
    %v1373 = vmul.f32 1.0, %v1372
    %v1374 = vrcp.pop %v1369
    %v1375 = vmul.f32 1.0, %v1374
    %v1376 = vtanh.pop %v1357
    %v1377 = vmul.f32 %v1373, %v1136
    %v1378 = vmul.f32 %v1371, %v1376
    %v1379 = vadd.f32 %v1377, %v1378
    %v1380 = vtanh.pop %v1379
    %v1381 = vmul.f32 %v1375, %v1380
    %s1382 = scalar_lea.vmem [#allocation3], 32
    %1383 = vst [vmem:[%s1382] sm:$0xff] %v1381
    %s1384 = smul.u32 5, 4
    %s1385 = smul.addr %s1384, 8
    %s1386 = scalar_lea.vmem [#allocation2], %s1385
    %v1387 = vld [vmem:[%s1386] sm:$0xff]
    %v1388 = vld [vmem:[%s1386 + $0x8] sm:$0xff]
    %v1389 = vld [vmem:[%s1386 + $0x10] sm:$0xff]
    %v1390 = vld [vmem:[%s1386 + $0x18] sm:$0xff]
    %v1391 = vld [vmem:[#allocation4] sm:$0xff]
    %v1392 = vld [vmem:[#allocation4 + $0x8] sm:$0xff]
    %v1393 = vld [vmem:[#allocation4 + $0x10] sm:$0xff]
    %v1394 = vld [vmem:[#allocation4 + $0x18] sm:$0xff]
    %v1395 = vld [vmem:[#allocation4 + $0x20] sm:$0xff]
    %v1396 = vld [vmem:[#allocation4 + $0x28] sm:$0xff]
    %v1397 = vld [vmem:[#allocation4 + $0x30] sm:$0xff]
    %v1398 = vld [vmem:[#allocation4 + $0x38] sm:$0xff]
    %v1399 = vld [vmem:[#allocation4 + $0x40] sm:$0xff]
    %v1400 = vld [vmem:[#allocation4 + $0x48] sm:$0xff]
    %v1401 = vld [vmem:[#allocation4 + $0x50] sm:$0xff]
    %v1402 = vld [vmem:[#allocation4 + $0x58] sm:$0xff]
    %v1403 = vld [vmem:[#allocation4 + $0x60] sm:$0xff]
    %v1404 = vld [vmem:[#allocation4 + $0x68] sm:$0xff]
    %v1405 = vld [vmem:[#allocation4 + $0x70] sm:$0xff]
    %v1406 = vld [vmem:[#allocation4 + $0x78] sm:$0xff]
    %v1407 = vld [vmem:[#allocation4 + $0x80] sm:$0xff]
    %v1408 = vld [vmem:[#allocation4 + $0x88] sm:$0xff]
    %v1409 = vld [vmem:[#allocation4 + $0x90] sm:$0xff]
    %v1410 = vld [vmem:[#allocation4 + $0x98] sm:$0xff]
    %v1411 = vld [vmem:[#allocation4 + $0xa0] sm:$0xff]
    %v1412 = vld [vmem:[#allocation4 + $0xa8] sm:$0xff]
    %v1413 = vld [vmem:[#allocation4 + $0xb0] sm:$0xff]
    %v1414 = vld [vmem:[#allocation4 + $0xb8] sm:$0xff]
    %v1415 = vld [vmem:[#allocation4 + $0xc0] sm:$0xff]
    %v1416 = vld [vmem:[#allocation4 + $0xc8] sm:$0xff]
    %v1417 = vld [vmem:[#allocation4 + $0xd0] sm:$0xff]
    %v1418 = vld [vmem:[#allocation4 + $0xd8] sm:$0xff]
    %v1419 = vld [vmem:[#allocation4 + $0xe0] sm:$0xff]
    %v1420 = vld [vmem:[#allocation4 + $0xe8] sm:$0xff]
    %v1421 = vld [vmem:[#allocation4 + $0xf0] sm:$0xff]
    %v1422 = vld [vmem:[#allocation4 + $0xf8] sm:$0xff]
    %v1423 = vld [vmem:[#allocation4 + $0x100] sm:$0xff]
    %v1424 = vld [vmem:[#allocation4 + $0x108] sm:$0xff]
    %v1425 = vld [vmem:[#allocation4 + $0x110] sm:$0xff]
    %v1426 = vld [vmem:[#allocation4 + $0x118] sm:$0xff]
    %v1427 = vld [vmem:[#allocation4 + $0x120] sm:$0xff]
    %v1428 = vld [vmem:[#allocation4 + $0x128] sm:$0xff]
    %v1429 = vld [vmem:[#allocation4 + $0x130] sm:$0xff]
    %v1430 = vld [vmem:[#allocation4 + $0x138] sm:$0xff]
    %v1431 = vld [vmem:[#allocation4 + $0x140] sm:$0xff]
    %v1432 = vld [vmem:[#allocation4 + $0x148] sm:$0xff]
    %v1433 = vld [vmem:[#allocation4 + $0x150] sm:$0xff]
    %v1434 = vld [vmem:[#allocation4 + $0x158] sm:$0xff]
    %v1435 = vld [vmem:[#allocation4 + $0x160] sm:$0xff]
    %v1436 = vld [vmem:[#allocation4 + $0x168] sm:$0xff]
    %v1437 = vld [vmem:[#allocation4 + $0x170] sm:$0xff]
    %v1438 = vld [vmem:[#allocation4 + $0x178] sm:$0xff]
    %v1439 = vld [vmem:[#allocation4 + $0x180] sm:$0xff]
    %v1440 = vld [vmem:[#allocation4 + $0x188] sm:$0xff]
    %v1441 = vld [vmem:[#allocation4 + $0x190] sm:$0xff]
    %v1442 = vld [vmem:[#allocation4 + $0x198] sm:$0xff]
    %v1443 = vld [vmem:[#allocation4 + $0x1a0] sm:$0xff]
    %v1444 = vld [vmem:[#allocation4 + $0x1a8] sm:$0xff]
    %v1445 = vld [vmem:[#allocation4 + $0x1b0] sm:$0xff]
    %v1446 = vld [vmem:[#allocation4 + $0x1b8] sm:$0xff]
    %v1447 = vld [vmem:[#allocation4 + $0x1c0] sm:$0xff]
    %v1448 = vld [vmem:[#allocation4 + $0x1c8] sm:$0xff]
    %v1449 = vld [vmem:[#allocation4 + $0x1d0] sm:$0xff]
    %v1450 = vld [vmem:[#allocation4 + $0x1d8] sm:$0xff]
    %v1451 = vld [vmem:[#allocation4 + $0x1e0] sm:$0xff]
    %v1452 = vld [vmem:[#allocation4 + $0x1e8] sm:$0xff]
    %v1453 = vld [vmem:[#allocation4 + $0x1f0] sm:$0xff]
    %v1454 = vld [vmem:[#allocation4 + $0x1f8] sm:$0xff]
    %1455 = vmatprep.subr.mxu0 %v1392
    %1456 = vmatpush1.msra.mxu0 %v1391
    %1457 = vmatprep.subr.mxu0 %v1396
    %1458 = vmatpush1.msra.mxu0 %v1395
    %1459 = vmatprep.subr.mxu0 %v1400
    %1460 = vmatpush1.msra.mxu0 %v1399
    %1461 = vmatprep.subr.mxu0 %v1404
    %1462 = vmatpush1.msra.mxu0 %v1403
    %1463 = vmatprep.subr.mxu0 %v1408
    %1464 = vmatpush1.msra.mxu0 %v1407
    %1465 = vmatprep.subr.mxu0 %v1412
    %1466 = vmatpush1.msra.mxu0 %v1411
    %1467 = vmatprep.subr.mxu0 %v1416
    %1468 = vmatpush1.msra.mxu0 %v1415
    %1469 = vmatprep.subr.mxu0 %v1420
    %1470 = vmatpush1.msra.mxu0 %v1419
    %1471 = vmatprep.subr.mxu0 %v1424
    %1472 = vmatpush1.msra.mxu0 %v1423
    %1473 = vmatprep.subr.mxu0 %v1428
    %1474 = vmatpush1.msra.mxu0 %v1427
    %1475 = vmatprep.subr.mxu0 %v1432
    %1476 = vmatpush1.msra.mxu0 %v1431
    %1477 = vmatprep.subr.mxu0 %v1436
    %1478 = vmatpush1.msra.mxu0 %v1435
    %1479 = vmatprep.subr.mxu0 %v1440
    %1480 = vmatpush1.msra.mxu0 %v1439
    %1481 = vmatprep.subr.mxu0 %v1444
    %1482 = vmatpush1.msra.mxu0 %v1443
    %1483 = vmatprep.subr.mxu0 %v1448
    %1484 = vmatpush1.msra.mxu0 %v1447
    %1485 = vmatprep.subr.mxu0 %v1452
    %1486 = vmatpush1.msra.mxu0 %v1451
    %1487 = vmatprep.subr.mxu0 0.0
    %1488 = vmatpush1.msra.mxu0 0.0
    %1489 = vmatprep.subr.mxu0 0.0
    %1490 = vmatpush1.msra.mxu0 0.0
    %1491 = vmatprep.subr.mxu0 0.0
    %1492 = vmatpush1.msra.mxu0 0.0
    %1493 = vmatprep.subr.mxu0 0.0
    %1494 = vmatpush1.msra.mxu0 0.0
    %1495 = vmatprep.subr.mxu0 0.0
    %1496 = vmatpush1.msra.mxu0 0.0
    %1497 = vmatprep.subr.mxu0 0.0
    %1498 = vmatpush1.msra.mxu0 0.0
    %1499 = vmatprep.subr.mxu0 0.0
    %1500 = vmatpush1.msra.mxu0 0.0
    %1501 = vmatprep.subr.mxu0 0.0
    %1502 = vmatpush1.msra.mxu0 0.0
    %1503 = vmatprep.subr.mxu0 0.0
    %1504 = vmatpush1.msra.mxu0 0.0
    %1505 = vmatprep.subr.mxu0 0.0
    %1506 = vmatpush1.msra.mxu0 0.0
    %1507 = vmatprep.subr.mxu0 0.0
    %1508 = vmatpush1.msra.mxu0 0.0
    %1509 = vmatprep.subr.mxu0 0.0
    %1510 = vmatpush1.msra.mxu0 0.0
    %1511 = vmatprep.subr.mxu0 0.0
    %1512 = vmatpush1.msra.mxu0 0.0
    %1513 = vmatprep.subr.mxu0 0.0
    %1514 = vmatpush1.msra.mxu0 0.0
    %1515 = vmatprep.subr.mxu0 0.0
    %1516 = vmatpush1.msra.mxu0 0.0
    %1517 = vmatprep.subr.mxu0 0.0
    %1518 = vmatpush1.msra.mxu0 0.0
    %1519 = vmatprep.mubr.f32.mxu0 0.0
    %1520 = vmatmul.mubr.f32.gmra.mrb[0].mxu0 %v1381
    %v1521 = vpop.f32.mrb[0].mxu0
    %v1522 = vadd.f32 0.0, %v1521
    %v1523 = vpop.f32.mrb[0].mxu0
    %v1524 = vadd.f32 0.0, %v1523
    %1525 = vdwg.mxu0
    %1526 = vmatprep.subr.mxu0 %v1394
    %1527 = vmatpush1.msra.mxu0 %v1393
    %1528 = vmatprep.subr.mxu0 %v1398
    %1529 = vmatpush1.msra.mxu0 %v1397
    %1530 = vmatprep.subr.mxu0 %v1402
    %1531 = vmatpush1.msra.mxu0 %v1401
    %1532 = vmatprep.subr.mxu0 %v1406
    %1533 = vmatpush1.msra.mxu0 %v1405
    %1534 = vmatprep.subr.mxu0 %v1410
    %1535 = vmatpush1.msra.mxu0 %v1409
    %1536 = vmatprep.subr.mxu0 %v1414
    %1537 = vmatpush1.msra.mxu0 %v1413
    %1538 = vmatprep.subr.mxu0 %v1418
    %1539 = vmatpush1.msra.mxu0 %v1417
    %1540 = vmatprep.subr.mxu0 %v1422
    %1541 = vmatpush1.msra.mxu0 %v1421
    %1542 = vmatprep.subr.mxu0 %v1426
    %1543 = vmatpush1.msra.mxu0 %v1425
    %1544 = vmatprep.subr.mxu0 %v1430
    %1545 = vmatpush1.msra.mxu0 %v1429
    %1546 = vmatprep.subr.mxu0 %v1434
    %1547 = vmatpush1.msra.mxu0 %v1433
    %1548 = vmatprep.subr.mxu0 %v1438
    %1549 = vmatpush1.msra.mxu0 %v1437
    %1550 = vmatprep.subr.mxu0 %v1442
    %1551 = vmatpush1.msra.mxu0 %v1441
    %1552 = vmatprep.subr.mxu0 %v1446
    %1553 = vmatpush1.msra.mxu0 %v1445
    %1554 = vmatprep.subr.mxu0 %v1450
    %1555 = vmatpush1.msra.mxu0 %v1449
    %1556 = vmatprep.subr.mxu0 %v1454
    %1557 = vmatpush1.msra.mxu0 %v1453
    %1558 = vmatprep.subr.mxu0 0.0
    %1559 = vmatpush1.msra.mxu0 0.0
    %1560 = vmatprep.subr.mxu0 0.0
    %1561 = vmatpush1.msra.mxu0 0.0
    %1562 = vmatprep.subr.mxu0 0.0
    %1563 = vmatpush1.msra.mxu0 0.0
    %1564 = vmatprep.subr.mxu0 0.0
    %1565 = vmatpush1.msra.mxu0 0.0
    %1566 = vmatprep.subr.mxu0 0.0
    %1567 = vmatpush1.msra.mxu0 0.0
    %1568 = vmatprep.subr.mxu0 0.0
    %1569 = vmatpush1.msra.mxu0 0.0
    %1570 = vmatprep.subr.mxu0 0.0
    %1571 = vmatpush1.msra.mxu0 0.0
    %1572 = vmatprep.subr.mxu0 0.0
    %1573 = vmatpush1.msra.mxu0 0.0
    %1574 = vmatprep.subr.mxu0 0.0
    %1575 = vmatpush1.msra.mxu0 0.0
    %1576 = vmatprep.subr.mxu0 0.0
    %1577 = vmatpush1.msra.mxu0 0.0
    %1578 = vmatprep.subr.mxu0 0.0
    %1579 = vmatpush1.msra.mxu0 0.0
    %1580 = vmatprep.subr.mxu0 0.0
    %1581 = vmatpush1.msra.mxu0 0.0
    %1582 = vmatprep.subr.mxu0 0.0
    %1583 = vmatpush1.msra.mxu0 0.0
    %1584 = vmatprep.subr.mxu0 0.0
    %1585 = vmatpush1.msra.mxu0 0.0
    %1586 = vmatprep.subr.mxu0 0.0
    %1587 = vmatpush1.msra.mxu0 0.0
    %1588 = vmatprep.subr.mxu0 0.0
    %1589 = vmatpush1.msra.mxu0 0.0
    %1590 = vmatprep.mubr.f32.mxu0 0.0
    %1591 = vmatmul.mubr.f32.gmra.mrb[0].mxu0 %v1381
    %v1592 = vpop.f32.mrb[0].mxu0
    %v1593 = vadd.f32 0.0, %v1592
    %v1594 = vpop.f32.mrb[0].mxu0
    %v1595 = vadd.f32 0.0, %v1594
    %1596 = vdwg.mxu0
    %v1597 = vadd.f32 %v1387, %v1522
    %v1598 = vadd.f32 %v1388, %v1524
    %v1599 = vadd.f32 %v1389, %v1593
    %v1600 = vadd.f32 %v1390, %v1595
    %v1601 = vxor.u32 %v1597, 2147483648
    %v1602 = vxor.u32 %v1598, 2147483648
    %v1603 = vxor.u32 %v1599, 2147483648
    %v1604 = vmul.f32 %v1601, 1.442695
    %v1605 = vpow.pop %v1604
    %v1606 = vmul.f32 %v1602, 1.442695
    %v1607 = vpow.pop %v1606
    %v1608 = vmul.f32 %v1603, 1.442695
    %v1609 = vpow.pop %v1608
    %v1610 = vadd.f32 %v1605, 1.0
    %v1611 = vadd.f32 %v1607, 1.0
    %v1612 = vadd.f32 %v1609, 1.0
    %v1613 = vrcp.pop %v1610
    %v1614 = vmul.f32 1.0, %v1613
    %v1615 = vrcp.pop %v1611
    %v1616 = vmul.f32 1.0, %v1615
    %v1617 = vrcp.pop %v1612
    %v1618 = vmul.f32 1.0, %v1617
    %v1619 = vtanh.pop %v1600
    %v1620 = vmul.f32 %v1616, %v1379
    %v1621 = vmul.f32 %v1614, %v1619
    %v1622 = vadd.f32 %v1620, %v1621
    %v1623 = vtanh.pop %v1622
    %v1624 = vmul.f32 %v1618, %v1623
    %s1625 = scalar_lea.vmem [#allocation3], 40
    %1626 = vst [vmem:[%s1625] sm:$0xff] %v1624
    %s1627 = smul.u32 6, 4
    %s1628 = smul.addr %s1627, 8
    %s1629 = scalar_lea.vmem [#allocation2], %s1628
    %v1630 = vld [vmem:[%s1629] sm:$0xff]
    %v1631 = vld [vmem:[%s1629 + $0x8] sm:$0xff]
    %v1632 = vld [vmem:[%s1629 + $0x10] sm:$0xff]
    %v1633 = vld [vmem:[%s1629 + $0x18] sm:$0xff]
    %v1634 = vld [vmem:[#allocation4] sm:$0xff]
    %v1635 = vld [vmem:[#allocation4 + $0x8] sm:$0xff]
    %v1636 = vld [vmem:[#allocation4 + $0x10] sm:$0xff]
    %v1637 = vld [vmem:[#allocation4 + $0x18] sm:$0xff]
    %v1638 = vld [vmem:[#allocation4 + $0x20] sm:$0xff]
    %v1639 = vld [vmem:[#allocation4 + $0x28] sm:$0xff]
    %v1640 = vld [vmem:[#allocation4 + $0x30] sm:$0xff]
    %v1641 = vld [vmem:[#allocation4 + $0x38] sm:$0xff]
    %v1642 = vld [vmem:[#allocation4 + $0x40] sm:$0xff]
    %v1643 = vld [vmem:[#allocation4 + $0x48] sm:$0xff]
    %v1644 = vld [vmem:[#allocation4 + $0x50] sm:$0xff]
    %v1645 = vld [vmem:[#allocation4 + $0x58] sm:$0xff]
    %v1646 = vld [vmem:[#allocation4 + $0x60] sm:$0xff]
    %v1647 = vld [vmem:[#allocation4 + $0x68] sm:$0xff]
    %v1648 = vld [vmem:[#allocation4 + $0x70] sm:$0xff]
    %v1649 = vld [vmem:[#allocation4 + $0x78] sm:$0xff]
    %v1650 = vld [vmem:[#allocation4 + $0x80] sm:$0xff]
    %v1651 = vld [vmem:[#allocation4 + $0x88] sm:$0xff]
    %v1652 = vld [vmem:[#allocation4 + $0x90] sm:$0xff]
    %v1653 = vld [vmem:[#allocation4 + $0x98] sm:$0xff]
    %v1654 = vld [vmem:[#allocation4 + $0xa0] sm:$0xff]
    %v1655 = vld [vmem:[#allocation4 + $0xa8] sm:$0xff]
    %v1656 = vld [vmem:[#allocation4 + $0xb0] sm:$0xff]
    %v1657 = vld [vmem:[#allocation4 + $0xb8] sm:$0xff]
    %v1658 = vld [vmem:[#allocation4 + $0xc0] sm:$0xff]
    %v1659 = vld [vmem:[#allocation4 + $0xc8] sm:$0xff]
    %v1660 = vld [vmem:[#allocation4 + $0xd0] sm:$0xff]
    %v1661 = vld [vmem:[#allocation4 + $0xd8] sm:$0xff]
    %v1662 = vld [vmem:[#allocation4 + $0xe0] sm:$0xff]
    %v1663 = vld [vmem:[#allocation4 + $0xe8] sm:$0xff]
    %v1664 = vld [vmem:[#allocation4 + $0xf0] sm:$0xff]
    %v1665 = vld [vmem:[#allocation4 + $0xf8] sm:$0xff]
    %v1666 = vld [vmem:[#allocation4 + $0x100] sm:$0xff]
    %v1667 = vld [vmem:[#allocation4 + $0x108] sm:$0xff]
    %v1668 = vld [vmem:[#allocation4 + $0x110] sm:$0xff]
    %v1669 = vld [vmem:[#allocation4 + $0x118] sm:$0xff]
    %v1670 = vld [vmem:[#allocation4 + $0x120] sm:$0xff]
    %v1671 = vld [vmem:[#allocation4 + $0x128] sm:$0xff]
    %v1672 = vld [vmem:[#allocation4 + $0x130] sm:$0xff]
    %v1673 = vld [vmem:[#allocation4 + $0x138] sm:$0xff]
    %v1674 = vld [vmem:[#allocation4 + $0x140] sm:$0xff]
    %v1675 = vld [vmem:[#allocation4 + $0x148] sm:$0xff]
    %v1676 = vld [vmem:[#allocation4 + $0x150] sm:$0xff]
    %v1677 = vld [vmem:[#allocation4 + $0x158] sm:$0xff]
    %v1678 = vld [vmem:[#allocation4 + $0x160] sm:$0xff]
    %v1679 = vld [vmem:[#allocation4 + $0x168] sm:$0xff]
    %v1680 = vld [vmem:[#allocation4 + $0x170] sm:$0xff]
    %v1681 = vld [vmem:[#allocation4 + $0x178] sm:$0xff]
    %v1682 = vld [vmem:[#allocation4 + $0x180] sm:$0xff]
    %v1683 = vld [vmem:[#allocation4 + $0x188] sm:$0xff]
    %v1684 = vld [vmem:[#allocation4 + $0x190] sm:$0xff]
    %v1685 = vld [vmem:[#allocation4 + $0x198] sm:$0xff]
    %v1686 = vld [vmem:[#allocation4 + $0x1a0] sm:$0xff]
    %v1687 = vld [vmem:[#allocation4 + $0x1a8] sm:$0xff]
    %v1688 = vld [vmem:[#allocation4 + $0x1b0] sm:$0xff]
    %v1689 = vld [vmem:[#allocation4 + $0x1b8] sm:$0xff]
    %v1690 = vld [vmem:[#allocation4 + $0x1c0] sm:$0xff]
    %v1691 = vld [vmem:[#allocation4 + $0x1c8] sm:$0xff]
    %v1692 = vld [vmem:[#allocation4 + $0x1d0] sm:$0xff]
    %v1693 = vld [vmem:[#allocation4 + $0x1d8] sm:$0xff]
    %v1694 = vld [vmem:[#allocation4 + $0x1e0] sm:$0xff]
    %v1695 = vld [vmem:[#allocation4 + $0x1e8] sm:$0xff]
    %v1696 = vld [vmem:[#allocation4 + $0x1f0] sm:$0xff]
    %v1697 = vld [vmem:[#allocation4 + $0x1f8] sm:$0xff]
    %1698 = vmatprep.subr.mxu0 %v1635
    %1699 = vmatpush1.msra.mxu0 %v1634
    %1700 = vmatprep.subr.mxu0 %v1639
    %1701 = vmatpush1.msra.mxu0 %v1638
    %1702 = vmatprep.subr.mxu0 %v1643
    %1703 = vmatpush1.msra.mxu0 %v1642
    %1704 = vmatprep.subr.mxu0 %v1647
    %1705 = vmatpush1.msra.mxu0 %v1646
    %1706 = vmatprep.subr.mxu0 %v1651
    %1707 = vmatpush1.msra.mxu0 %v1650
    %1708 = vmatprep.subr.mxu0 %v1655
    %1709 = vmatpush1.msra.mxu0 %v1654
    %1710 = vmatprep.subr.mxu0 %v1659
    %1711 = vmatpush1.msra.mxu0 %v1658
    %1712 = vmatprep.subr.mxu0 %v1663
    %1713 = vmatpush1.msra.mxu0 %v1662
    %1714 = vmatprep.subr.mxu0 %v1667
    %1715 = vmatpush1.msra.mxu0 %v1666
    %1716 = vmatprep.subr.mxu0 %v1671
    %1717 = vmatpush1.msra.mxu0 %v1670
    %1718 = vmatprep.subr.mxu0 %v1675
    %1719 = vmatpush1.msra.mxu0 %v1674
    %1720 = vmatprep.subr.mxu0 %v1679
    %1721 = vmatpush1.msra.mxu0 %v1678
    %1722 = vmatprep.subr.mxu0 %v1683
    %1723 = vmatpush1.msra.mxu0 %v1682
    %1724 = vmatprep.subr.mxu0 %v1687
    %1725 = vmatpush1.msra.mxu0 %v1686
    %1726 = vmatprep.subr.mxu0 %v1691
    %1727 = vmatpush1.msra.mxu0 %v1690
    %1728 = vmatprep.subr.mxu0 %v1695
    %1729 = vmatpush1.msra.mxu0 %v1694
    %1730 = vmatprep.subr.mxu0 0.0
    %1731 = vmatpush1.msra.mxu0 0.0
    %1732 = vmatprep.subr.mxu0 0.0
    %1733 = vmatpush1.msra.mxu0 0.0
    %1734 = vmatprep.subr.mxu0 0.0
    %1735 = vmatpush1.msra.mxu0 0.0
    %1736 = vmatprep.subr.mxu0 0.0
    %1737 = vmatpush1.msra.mxu0 0.0
    %1738 = vmatprep.subr.mxu0 0.0
    %1739 = vmatpush1.msra.mxu0 0.0
    %1740 = vmatprep.subr.mxu0 0.0
    %1741 = vmatpush1.msra.mxu0 0.0
    %1742 = vmatprep.subr.mxu0 0.0
    %1743 = vmatpush1.msra.mxu0 0.0
    %1744 = vmatprep.subr.mxu0 0.0
    %1745 = vmatpush1.msra.mxu0 0.0
    %1746 = vmatprep.subr.mxu0 0.0
    %1747 = vmatpush1.msra.mxu0 0.0
    %1748 = vmatprep.subr.mxu0 0.0
    %1749 = vmatpush1.msra.mxu0 0.0
    %1750 = vmatprep.subr.mxu0 0.0
    %1751 = vmatpush1.msra.mxu0 0.0
    %1752 = vmatprep.subr.mxu0 0.0
    %1753 = vmatpush1.msra.mxu0 0.0
    %1754 = vmatprep.subr.mxu0 0.0
    %1755 = vmatpush1.msra.mxu0 0.0
    %1756 = vmatprep.subr.mxu0 0.0
    %1757 = vmatpush1.msra.mxu0 0.0
    %1758 = vmatprep.subr.mxu0 0.0
    %1759 = vmatpush1.msra.mxu0 0.0
    %1760 = vmatprep.subr.mxu0 0.0
    %1761 = vmatpush1.msra.mxu0 0.0
    %1762 = vmatprep.mubr.f32.mxu0 0.0
    %1763 = vmatmul.mubr.f32.gmra.mrb[0].mxu0 %v1624
    %v1764 = vpop.f32.mrb[0].mxu0
    %v1765 = vadd.f32 0.0, %v1764
    %v1766 = vpop.f32.mrb[0].mxu0
    %v1767 = vadd.f32 0.0, %v1766
    %1768 = vdwg.mxu0
    %1769 = vmatprep.subr.mxu0 %v1637
    %1770 = vmatpush1.msra.mxu0 %v1636
    %1771 = vmatprep.subr.mxu0 %v1641
    %1772 = vmatpush1.msra.mxu0 %v1640
    %1773 = vmatprep.subr.mxu0 %v1645
    %1774 = vmatpush1.msra.mxu0 %v1644
    %1775 = vmatprep.subr.mxu0 %v1649
    %1776 = vmatpush1.msra.mxu0 %v1648
    %1777 = vmatprep.subr.mxu0 %v1653
    %1778 = vmatpush1.msra.mxu0 %v1652
    %1779 = vmatprep.subr.mxu0 %v1657
    %1780 = vmatpush1.msra.mxu0 %v1656
    %1781 = vmatprep.subr.mxu0 %v1661
    %1782 = vmatpush1.msra.mxu0 %v1660
    %1783 = vmatprep.subr.mxu0 %v1665
    %1784 = vmatpush1.msra.mxu0 %v1664
    %1785 = vmatprep.subr.mxu0 %v1669
    %1786 = vmatpush1.msra.mxu0 %v1668
    %1787 = vmatprep.subr.mxu0 %v1673
    %1788 = vmatpush1.msra.mxu0 %v1672
    %1789 = vmatprep.subr.mxu0 %v1677
    %1790 = vmatpush1.msra.mxu0 %v1676
    %1791 = vmatprep.subr.mxu0 %v1681
    %1792 = vmatpush1.msra.mxu0 %v1680
    %1793 = vmatprep.subr.mxu0 %v1685
    %1794 = vmatpush1.msra.mxu0 %v1684
    %1795 = vmatprep.subr.mxu0 %v1689
    %1796 = vmatpush1.msra.mxu0 %v1688
    %1797 = vmatprep.subr.mxu0 %v1693
    %1798 = vmatpush1.msra.mxu0 %v1692
    %1799 = vmatprep.subr.mxu0 %v1697
    %1800 = vmatpush1.msra.mxu0 %v1696
    %1801 = vmatprep.subr.mxu0 0.0
    %1802 = vmatpush1.msra.mxu0 0.0
    %1803 = vmatprep.subr.mxu0 0.0
    %1804 = vmatpush1.msra.mxu0 0.0
    %1805 = vmatprep.subr.mxu0 0.0
    %1806 = vmatpush1.msra.mxu0 0.0
    %1807 = vmatprep.subr.mxu0 0.0
    %1808 = vmatpush1.msra.mxu0 0.0
    %1809 = vmatprep.subr.mxu0 0.0
    %1810 = vmatpush1.msra.mxu0 0.0
    %1811 = vmatprep.subr.mxu0 0.0
    %1812 = vmatpush1.msra.mxu0 0.0
    %1813 = vmatprep.subr.mxu0 0.0
    %1814 = vmatpush1.msra.mxu0 0.0
    %1815 = vmatprep.subr.mxu0 0.0
    %1816 = vmatpush1.msra.mxu0 0.0
    %1817 = vmatprep.subr.mxu0 0.0
    %1818 = vmatpush1.msra.mxu0 0.0
    %1819 = vmatprep.subr.mxu0 0.0
    %1820 = vmatpush1.msra.mxu0 0.0
    %1821 = vmatprep.subr.mxu0 0.0
    %1822 = vmatpush1.msra.mxu0 0.0
    %1823 = vmatprep.subr.mxu0 0.0
    %1824 = vmatpush1.msra.mxu0 0.0
    %1825 = vmatprep.subr.mxu0 0.0
    %1826 = vmatpush1.msra.mxu0 0.0
    %1827 = vmatprep.subr.mxu0 0.0
    %1828 = vmatpush1.msra.mxu0 0.0
    %1829 = vmatprep.subr.mxu0 0.0
    %1830 = vmatpush1.msra.mxu0 0.0
    %1831 = vmatprep.subr.mxu0 0.0
    %1832 = vmatpush1.msra.mxu0 0.0
    %1833 = vmatprep.mubr.f32.mxu0 0.0
    %1834 = vmatmul.mubr.f32.gmra.mrb[0].mxu0 %v1624
    %v1835 = vpop.f32.mrb[0].mxu0
    %v1836 = vadd.f32 0.0, %v1835
    %v1837 = vpop.f32.mrb[0].mxu0
    %v1838 = vadd.f32 0.0, %v1837
    %1839 = vdwg.mxu0
    %v1840 = vadd.f32 %v1630, %v1765
    %v1841 = vadd.f32 %v1631, %v1767
    %v1842 = vadd.f32 %v1632, %v1836
    %v1843 = vadd.f32 %v1633, %v1838
    %v1844 = vxor.u32 %v1840, 2147483648
    %v1845 = vxor.u32 %v1841, 2147483648
    %v1846 = vxor.u32 %v1842, 2147483648
    %v1847 = vmul.f32 %v1844, 1.442695
    %v1848 = vpow.pop %v1847
    %v1849 = vmul.f32 %v1845, 1.442695
    %v1850 = vpow.pop %v1849
    %v1851 = vmul.f32 %v1846, 1.442695
    %v1852 = vpow.pop %v1851
    %v1853 = vadd.f32 %v1848, 1.0
    %v1854 = vadd.f32 %v1850, 1.0
    %v1855 = vadd.f32 %v1852, 1.0
    %v1856 = vrcp.pop %v1853
    %v1857 = vmul.f32 1.0, %v1856
    %v1858 = vrcp.pop %v1854
    %v1859 = vmul.f32 1.0, %v1858
    %v1860 = vrcp.pop %v1855
    %v1861 = vmul.f32 1.0, %v1860
    %v1862 = vtanh.pop %v1843
    %v1863 = vmul.f32 %v1859, %v1622
    %v1864 = vmul.f32 %v1857, %v1862
    %v1865 = vadd.f32 %v1863, %v1864
    %v1866 = vtanh.pop %v1865
    %v1867 = vmul.f32 %v1861, %v1866
    %s1868 = scalar_lea.vmem [#allocation3], 48
    %1869 = vst [vmem:[%s1868] sm:$0xff] %v1867
    %s1870 = smul.u32 7, 4
    %s1871 = smul.addr %s1870, 8
    %s1872 = scalar_lea.vmem [#allocation2], %s1871
    %v1873 = vld [vmem:[%s1872] sm:$0xff]
    %v1874 = vld [vmem:[%s1872 + $0x8] sm:$0xff]
    %v1875 = vld [vmem:[%s1872 + $0x10] sm:$0xff]
    %v1876 = vld [vmem:[%s1872 + $0x18] sm:$0xff]
    %v1877 = vld [vmem:[#allocation4] sm:$0xff]
    %v1878 = vld [vmem:[#allocation4 + $0x8] sm:$0xff]
    %v1879 = vld [vmem:[#allocation4 + $0x10] sm:$0xff]
    %v1880 = vld [vmem:[#allocation4 + $0x18] sm:$0xff]
    %v1881 = vld [vmem:[#allocation4 + $0x20] sm:$0xff]
    %v1882 = vld [vmem:[#allocation4 + $0x28] sm:$0xff]
    %v1883 = vld [vmem:[#allocation4 + $0x30] sm:$0xff]
    %v1884 = vld [vmem:[#allocation4 + $0x38] sm:$0xff]
    %v1885 = vld [vmem:[#allocation4 + $0x40] sm:$0xff]
    %v1886 = vld [vmem:[#allocation4 + $0x48] sm:$0xff]
    %v1887 = vld [vmem:[#allocation4 + $0x50] sm:$0xff]
    %v1888 = vld [vmem:[#allocation4 + $0x58] sm:$0xff]
    %v1889 = vld [vmem:[#allocation4 + $0x60] sm:$0xff]
    %v1890 = vld [vmem:[#allocation4 + $0x68] sm:$0xff]
    %v1891 = vld [vmem:[#allocation4 + $0x70] sm:$0xff]
    %v1892 = vld [vmem:[#allocation4 + $0x78] sm:$0xff]
    %v1893 = vld [vmem:[#allocation4 + $0x80] sm:$0xff]
    %v1894 = vld [vmem:[#allocation4 + $0x88] sm:$0xff]
    %v1895 = vld [vmem:[#allocation4 + $0x90] sm:$0xff]
    %v1896 = vld [vmem:[#allocation4 + $0x98] sm:$0xff]
    %v1897 = vld [vmem:[#allocation4 + $0xa0] sm:$0xff]
    %v1898 = vld [vmem:[#allocation4 + $0xa8] sm:$0xff]
    %v1899 = vld [vmem:[#allocation4 + $0xb0] sm:$0xff]
    %v1900 = vld [vmem:[#allocation4 + $0xb8] sm:$0xff]
    %v1901 = vld [vmem:[#allocation4 + $0xc0] sm:$0xff]
    %v1902 = vld [vmem:[#allocation4 + $0xc8] sm:$0xff]
    %v1903 = vld [vmem:[#allocation4 + $0xd0] sm:$0xff]
    %v1904 = vld [vmem:[#allocation4 + $0xd8] sm:$0xff]
    %v1905 = vld [vmem:[#allocation4 + $0xe0] sm:$0xff]
    %v1906 = vld [vmem:[#allocation4 + $0xe8] sm:$0xff]
    %v1907 = vld [vmem:[#allocation4 + $0xf0] sm:$0xff]
    %v1908 = vld [vmem:[#allocation4 + $0xf8] sm:$0xff]
    %v1909 = vld [vmem:[#allocation4 + $0x100] sm:$0xff]
    %v1910 = vld [vmem:[#allocation4 + $0x108] sm:$0xff]
    %v1911 = vld [vmem:[#allocation4 + $0x110] sm:$0xff]
    %v1912 = vld [vmem:[#allocation4 + $0x118] sm:$0xff]
    %v1913 = vld [vmem:[#allocation4 + $0x120] sm:$0xff]
    %v1914 = vld [vmem:[#allocation4 + $0x128] sm:$0xff]
    %v1915 = vld [vmem:[#allocation4 + $0x130] sm:$0xff]
    %v1916 = vld [vmem:[#allocation4 + $0x138] sm:$0xff]
    %v1917 = vld [vmem:[#allocation4 + $0x140] sm:$0xff]
    %v1918 = vld [vmem:[#allocation4 + $0x148] sm:$0xff]
    %v1919 = vld [vmem:[#allocation4 + $0x150] sm:$0xff]
    %v1920 = vld [vmem:[#allocation4 + $0x158] sm:$0xff]
    %v1921 = vld [vmem:[#allocation4 + $0x160] sm:$0xff]
    %v1922 = vld [vmem:[#allocation4 + $0x168] sm:$0xff]
    %v1923 = vld [vmem:[#allocation4 + $0x170] sm:$0xff]
    %v1924 = vld [vmem:[#allocation4 + $0x178] sm:$0xff]
    %v1925 = vld [vmem:[#allocation4 + $0x180] sm:$0xff]
    %v1926 = vld [vmem:[#allocation4 + $0x188] sm:$0xff]
    %v1927 = vld [vmem:[#allocation4 + $0x190] sm:$0xff]
    %v1928 = vld [vmem:[#allocation4 + $0x198] sm:$0xff]
    %v1929 = vld [vmem:[#allocation4 + $0x1a0] sm:$0xff]
    %v1930 = vld [vmem:[#allocation4 + $0x1a8] sm:$0xff]
    %v1931 = vld [vmem:[#allocation4 + $0x1b0] sm:$0xff]
    %v1932 = vld [vmem:[#allocation4 + $0x1b8] sm:$0xff]
    %v1933 = vld [vmem:[#allocation4 + $0x1c0] sm:$0xff]
    %v1934 = vld [vmem:[#allocation4 + $0x1c8] sm:$0xff]
    %v1935 = vld [vmem:[#allocation4 + $0x1d0] sm:$0xff]
    %v1936 = vld [vmem:[#allocation4 + $0x1d8] sm:$0xff]
    %v1937 = vld [vmem:[#allocation4 + $0x1e0] sm:$0xff]
    %v1938 = vld [vmem:[#allocation4 + $0x1e8] sm:$0xff]
    %v1939 = vld [vmem:[#allocation4 + $0x1f0] sm:$0xff]
    %v1940 = vld [vmem:[#allocation4 + $0x1f8] sm:$0xff]
    %1941 = vmatprep.subr.mxu0 %v1878
    %1942 = vmatpush1.msra.mxu0 %v1877
    %1943 = vmatprep.subr.mxu0 %v1882
    %1944 = vmatpush1.msra.mxu0 %v1881
    %1945 = vmatprep.subr.mxu0 %v1886
    %1946 = vmatpush1.msra.mxu0 %v1885
    %1947 = vmatprep.subr.mxu0 %v1890
    %1948 = vmatpush1.msra.mxu0 %v1889
    %1949 = vmatprep.subr.mxu0 %v1894
    %1950 = vmatpush1.msra.mxu0 %v1893
    %1951 = vmatprep.subr.mxu0 %v1898
    %1952 = vmatpush1.msra.mxu0 %v1897
    %1953 = vmatprep.subr.mxu0 %v1902
    %1954 = vmatpush1.msra.mxu0 %v1901
    %1955 = vmatprep.subr.mxu0 %v1906
    %1956 = vmatpush1.msra.mxu0 %v1905
    %1957 = vmatprep.subr.mxu0 %v1910
    %1958 = vmatpush1.msra.mxu0 %v1909
    %1959 = vmatprep.subr.mxu0 %v1914
    %1960 = vmatpush1.msra.mxu0 %v1913
    %1961 = vmatprep.subr.mxu0 %v1918
    %1962 = vmatpush1.msra.mxu0 %v1917
    %1963 = vmatprep.subr.mxu0 %v1922
    %1964 = vmatpush1.msra.mxu0 %v1921
    %1965 = vmatprep.subr.mxu0 %v1926
    %1966 = vmatpush1.msra.mxu0 %v1925
    %1967 = vmatprep.subr.mxu0 %v1930
    %1968 = vmatpush1.msra.mxu0 %v1929
    %1969 = vmatprep.subr.mxu0 %v1934
    %1970 = vmatpush1.msra.mxu0 %v1933
    %1971 = vmatprep.subr.mxu0 %v1938
    %1972 = vmatpush1.msra.mxu0 %v1937
    %1973 = vmatprep.subr.mxu0 0.0
    %1974 = vmatpush1.msra.mxu0 0.0
    %1975 = vmatprep.subr.mxu0 0.0
    %1976 = vmatpush1.msra.mxu0 0.0
    %1977 = vmatprep.subr.mxu0 0.0
    %1978 = vmatpush1.msra.mxu0 0.0
    %1979 = vmatprep.subr.mxu0 0.0
    %1980 = vmatpush1.msra.mxu0 0.0
    %1981 = vmatprep.subr.mxu0 0.0
    %1982 = vmatpush1.msra.mxu0 0.0
    %1983 = vmatprep.subr.mxu0 0.0
    %1984 = vmatpush1.msra.mxu0 0.0
    %1985 = vmatprep.subr.mxu0 0.0
    %1986 = vmatpush1.msra.mxu0 0.0
    %1987 = vmatprep.subr.mxu0 0.0
    %1988 = vmatpush1.msra.mxu0 0.0
    %1989 = vmatprep.subr.mxu0 0.0
    %1990 = vmatpush1.msra.mxu0 0.0
    %1991 = vmatprep.subr.mxu0 0.0
    %1992 = vmatpush1.msra.mxu0 0.0
    %1993 = vmatprep.subr.mxu0 0.0
    %1994 = vmatpush1.msra.mxu0 0.0
    %1995 = vmatprep.subr.mxu0 0.0
    %1996 = vmatpush1.msra.mxu0 0.0
    %1997 = vmatprep.subr.mxu0 0.0
    %1998 = vmatpush1.msra.mxu0 0.0
    %1999 = vmatprep.subr.mxu0 0.0
    %2000 = vmatpush1.msra.mxu0 0.0
    %2001 = vmatprep.subr.mxu0 0.0
    %2002 = vmatpush1.msra.mxu0 0.0
    %2003 = vmatprep.subr.mxu0 0.0
    %2004 = vmatpush1.msra.mxu0 0.0
    %2005 = vmatprep.mubr.f32.mxu0 0.0
    %2006 = vmatmul.mubr.f32.gmra.mrb[0].mxu0 %v1867
    %v2007 = vpop.f32.mrb[0].mxu0
    %v2008 = vadd.f32 0.0, %v2007
    %v2009 = vpop.f32.mrb[0].mxu0
    %v2010 = vadd.f32 0.0, %v2009
    %2011 = vdwg.mxu0
    %2012 = vmatprep.subr.mxu0 %v1880
    %2013 = vmatpush1.msra.mxu0 %v1879
    %2014 = vmatprep.subr.mxu0 %v1884
    %2015 = vmatpush1.msra.mxu0 %v1883
    %2016 = vmatprep.subr.mxu0 %v1888
    %2017 = vmatpush1.msra.mxu0 %v1887
    %2018 = vmatprep.subr.mxu0 %v1892
    %2019 = vmatpush1.msra.mxu0 %v1891
    %2020 = vmatprep.subr.mxu0 %v1896
    %2021 = vmatpush1.msra.mxu0 %v1895
    %2022 = vmatprep.subr.mxu0 %v1900
    %2023 = vmatpush1.msra.mxu0 %v1899
    %2024 = vmatprep.subr.mxu0 %v1904
    %2025 = vmatpush1.msra.mxu0 %v1903
    %2026 = vmatprep.subr.mxu0 %v1908
    %2027 = vmatpush1.msra.mxu0 %v1907
    %2028 = vmatprep.subr.mxu0 %v1912
    %2029 = vmatpush1.msra.mxu0 %v1911
    %2030 = vmatprep.subr.mxu0 %v1916
    %2031 = vmatpush1.msra.mxu0 %v1915
    %2032 = vmatprep.subr.mxu0 %v1920
    %2033 = vmatpush1.msra.mxu0 %v1919
    %2034 = vmatprep.subr.mxu0 %v1924
    %2035 = vmatpush1.msra.mxu0 %v1923
    %2036 = vmatprep.subr.mxu0 %v1928
    %2037 = vmatpush1.msra.mxu0 %v1927
    %2038 = vmatprep.subr.mxu0 %v1932
    %2039 = vmatpush1.msra.mxu0 %v1931
    %2040 = vmatprep.subr.mxu0 %v1936
    %2041 = vmatpush1.msra.mxu0 %v1935
    %2042 = vmatprep.subr.mxu0 %v1940
    %2043 = vmatpush1.msra.mxu0 %v1939
    %2044 = vmatprep.subr.mxu0 0.0
    %2045 = vmatpush1.msra.mxu0 0.0
    %2046 = vmatprep.subr.mxu0 0.0
    %2047 = vmatpush1.msra.mxu0 0.0
    %2048 = vmatprep.subr.mxu0 0.0
    %2049 = vmatpush1.msra.mxu0 0.0
    %2050 = vmatprep.subr.mxu0 0.0
    %2051 = vmatpush1.msra.mxu0 0.0
    %2052 = vmatprep.subr.mxu0 0.0
    %2053 = vmatpush1.msra.mxu0 0.0
    %2054 = vmatprep.subr.mxu0 0.0
    %2055 = vmatpush1.msra.mxu0 0.0
    %2056 = vmatprep.subr.mxu0 0.0
    %2057 = vmatpush1.msra.mxu0 0.0
    %2058 = vmatprep.subr.mxu0 0.0
    %2059 = vmatpush1.msra.mxu0 0.0
    %2060 = vmatprep.subr.mxu0 0.0
    %2061 = vmatpush1.msra.mxu0 0.0
    %2062 = vmatprep.subr.mxu0 0.0
    %2063 = vmatpush1.msra.mxu0 0.0
    %2064 = vmatprep.subr.mxu0 0.0
    %2065 = vmatpush1.msra.mxu0 0.0
    %2066 = vmatprep.subr.mxu0 0.0
    %2067 = vmatpush1.msra.mxu0 0.0
    %2068 = vmatprep.subr.mxu0 0.0
    %2069 = vmatpush1.msra.mxu0 0.0
    %2070 = vmatprep.subr.mxu0 0.0
    %2071 = vmatpush1.msra.mxu0 0.0
    %2072 = vmatprep.subr.mxu0 0.0
    %2073 = vmatpush1.msra.mxu0 0.0
    %2074 = vmatprep.subr.mxu0 0.0
    %2075 = vmatpush1.msra.mxu0 0.0
    %2076 = vmatprep.mubr.f32.mxu0 0.0
    %2077 = vmatmul.mubr.f32.gmra.mrb[0].mxu0 %v1867
    %v2078 = vpop.f32.mrb[0].mxu0
    %v2079 = vadd.f32 0.0, %v2078
    %v2080 = vpop.f32.mrb[0].mxu0
    %v2081 = vadd.f32 0.0, %v2080
    %2082 = vdwg.mxu0
    %v2083 = vadd.f32 %v1873, %v2008
    %v2084 = vadd.f32 %v1874, %v2010
    %v2085 = vadd.f32 %v1875, %v2079
    %v2086 = vadd.f32 %v1876, %v2081
    %v2087 = vxor.u32 %v2083, 2147483648
    %v2088 = vxor.u32 %v2084, 2147483648
    %v2089 = vxor.u32 %v2085, 2147483648
    %v2090 = vmul.f32 %v2087, 1.442695
    %v2091 = vpow.pop %v2090
    %v2092 = vmul.f32 %v2088, 1.442695
    %v2093 = vpow.pop %v2092
    %v2094 = vmul.f32 %v2089, 1.442695
    %v2095 = vpow.pop %v2094
    %v2096 = vadd.f32 %v2091, 1.0
    %v2097 = vadd.f32 %v2093, 1.0
    %v2098 = vadd.f32 %v2095, 1.0
    %v2099 = vrcp.pop %v2096
    %v2100 = vmul.f32 1.0, %v2099
    %v2101 = vrcp.pop %v2097
    %v2102 = vmul.f32 1.0, %v2101
    %v2103 = vrcp.pop %v2098
    %v2104 = vmul.f32 1.0, %v2103
    %v2105 = vtanh.pop %v2086
    %v2106 = vmul.f32 %v2102, %v1865
    %v2107 = vmul.f32 %v2100, %v2105
    %v2108 = vadd.f32 %v2106, %v2107
    %v2109 = vtanh.pop %v2108
    %v2110 = vmul.f32 %v2104, %v2109
    %s2111 = scalar_lea.vmem [#allocation3], 56
    %2112 = vst [vmem:[%s2111] sm:$0xff] %v2110
    %v2113 = vld [vmem:[#allocation3] sm:$0xff]
    %v2114 = vld [vmem:[#allocation3 + $0x8] sm:$0xff]
    %v2115 = vld [vmem:[#allocation3 + $0x10] sm:$0xff]
    %v2116 = vld [vmem:[#allocation3 + $0x18] sm:$0xff]
    %v2117 = vld [vmem:[#allocation3 + $0x20] sm:$0xff]
    %v2118 = vld [vmem:[#allocation3 + $0x28] sm:$0xff]
    %v2119 = vld [vmem:[#allocation3 + $0x30] sm:$0xff]
    %v2120 = vld [vmem:[#allocation3 + $0x38] sm:$0xff]
    %v2121 = vld [vmem:[#allocation6] sm:$0xff]
    %v2122 = vld [vmem:[#allocation6 + $0x8] sm:$0xff]
    %v2123 = vld [vmem:[#allocation6 + $0x10] sm:$0xff]
    %v2124 = vld [vmem:[#allocation6 + $0x18] sm:$0xff]
    %v2125 = vld [vmem:[#allocation6 + $0x20] sm:$0xff]
    %v2126 = vld [vmem:[#allocation6 + $0x28] sm:$0xff]
    %v2127 = vld [vmem:[#allocation6 + $0x30] sm:$0xff]
    %v2128 = vld [vmem:[#allocation6 + $0x38] sm:$0xff]
    %v2129 = vld [vmem:[#allocation6 + $0x40] sm:$0xff]
    %v2130 = vld [vmem:[#allocation6 + $0x48] sm:$0xff]
    %v2131 = vld [vmem:[#allocation6 + $0x50] sm:$0xff]
    %v2132 = vld [vmem:[#allocation6 + $0x58] sm:$0xff]
    %v2133 = vld [vmem:[#allocation6 + $0x60] sm:$0xff]
    %v2134 = vld [vmem:[#allocation6 + $0x68] sm:$0xff]
    %v2135 = vld [vmem:[#allocation6 + $0x70] sm:$0xff]
    %v2136 = vld [vmem:[#allocation6 + $0x78] sm:$0xff]
    %v2137 = vld [vmem:[%s5] sm:$0x1]
    %v2139 = vlaneseq
    %v2140 = vshrl.u32 %v2139, 7
    %v2141 = vsub.s32 0, %v2140
    %v2142 = vrot.slane %v2137, %v2141
    %2144 = vmatprep.subr.mxu0 0.0
    %2145 = vmatpush1.msra.mxu0 %v2121
    %2146 = vmatprep.subr.mxu0 0.0
    %2147 = vmatpush1.msra.mxu0 %v2122
    %2148 = vmatprep.subr.mxu0 0.0
    %2149 = vmatpush1.msra.mxu0 %v2123
    %2150 = vmatprep.subr.mxu0 0.0
    %2151 = vmatpush1.msra.mxu0 %v2124
    %2152 = vmatprep.subr.mxu0 0.0
    %2153 = vmatpush1.msra.mxu0 %v2125
    %2154 = vmatprep.subr.mxu0 0.0
    %2155 = vmatpush1.msra.mxu0 %v2126
    %2156 = vmatprep.subr.mxu0 0.0
    %2157 = vmatpush1.msra.mxu0 %v2127
    %2158 = vmatprep.subr.mxu0 0.0
    %2159 = vmatpush1.msra.mxu0 %v2128
    %2160 = vmatprep.subr.mxu0 0.0
    %2161 = vmatpush1.msra.mxu0 %v2129
    %2162 = vmatprep.subr.mxu0 0.0
    %2163 = vmatpush1.msra.mxu0 %v2130
    %2164 = vmatprep.subr.mxu0 0.0
    %2165 = vmatpush1.msra.mxu0 %v2131
    %2166 = vmatprep.subr.mxu0 0.0
    %2167 = vmatpush1.msra.mxu0 %v2132
    %2168 = vmatprep.subr.mxu0 0.0
    %2169 = vmatpush1.msra.mxu0 %v2133
    %2170 = vmatprep.subr.mxu0 0.0
    %2171 = vmatpush1.msra.mxu0 %v2134
    %2172 = vmatprep.subr.mxu0 0.0
    %2173 = vmatpush1.msra.mxu0 %v2135
    %2174 = vmatprep.subr.mxu0 0.0
    %2175 = vmatpush1.msra.mxu0 %v2136
    %2176 = vmatprep.subr.mxu0 0.0
    %2177 = vmatpush1.msra.mxu0 0.0
    %2178 = vmatprep.subr.mxu0 0.0
    %2179 = vmatpush1.msra.mxu0 0.0
    %2180 = vmatprep.subr.mxu0 0.0
    %2181 = vmatpush1.msra.mxu0 0.0
    %2182 = vmatprep.subr.mxu0 0.0
    %2183 = vmatpush1.msra.mxu0 0.0
    %2184 = vmatprep.subr.mxu0 0.0
    %2185 = vmatpush1.msra.mxu0 0.0
    %2186 = vmatprep.subr.mxu0 0.0
    %2187 = vmatpush1.msra.mxu0 0.0
    %2188 = vmatprep.subr.mxu0 0.0
    %2189 = vmatpush1.msra.mxu0 0.0
    %2190 = vmatprep.subr.mxu0 0.0
    %2191 = vmatpush1.msra.mxu0 0.0
    %2192 = vmatprep.subr.mxu0 0.0
    %2193 = vmatpush1.msra.mxu0 0.0
    %2194 = vmatprep.subr.mxu0 0.0
    %2195 = vmatpush1.msra.mxu0 0.0
    %2196 = vmatprep.subr.mxu0 0.0
    %2197 = vmatpush1.msra.mxu0 0.0
    %2198 = vmatprep.subr.mxu0 0.0
    %2199 = vmatpush1.msra.mxu0 0.0
    %2200 = vmatprep.subr.mxu0 0.0
    %2201 = vmatpush1.msra.mxu0 0.0
    %2202 = vmatprep.subr.mxu0 0.0
    %2203 = vmatpush1.msra.mxu0 0.0
    %2204 = vmatprep.subr.mxu0 0.0
    %2205 = vmatpush1.msra.mxu0 0.0
    %2206 = vmatprep.subr.mxu0 0.0
    %2207 = vmatpush1.msra.mxu0 0.0
    %2208 = vmatprep.mubr.f32.mxu0 0.0
    %2209 = vmatmul.mubr.f32.gmra.mrb[0].mxu0 %v2113
    %v2210 = vpop.f32.mrb[0].mxu0
    %v2211 = vadd.f32 %v2142, %v2210
    %v2212 = vpop.f32.mrb[0].mxu0
    %2213 = vmatprep.mubr.f32.mxu0 0.0
    %2214 = vmatmul.mubr.f32.gmra.mrb[0].mxu0 %v2114
    %v2215 = vpop.f32.mrb[0].mxu0
    %v2216 = vadd.f32 %v2142, %v2215
    %v2217 = vpop.f32.mrb[0].mxu0
    %2218 = vmatprep.mubr.f32.mxu0 0.0
    %2219 = vmatmul.mubr.f32.gmra.mrb[0].mxu0 %v2115
    %v2220 = vpop.f32.mrb[0].mxu0
    %v2221 = vadd.f32 %v2142, %v2220
    %v2222 = vpop.f32.mrb[0].mxu0
    %2223 = vmatprep.mubr.f32.mxu0 0.0
    %2224 = vmatmul.mubr.f32.gmra.mrb[0].mxu0 %v2116
    %v2225 = vpop.f32.mrb[0].mxu0
    %v2226 = vadd.f32 %v2142, %v2225
    %v2227 = vpop.f32.mrb[0].mxu0
    %2228 = vmatprep.mubr.f32.mxu0 0.0
    %2229 = vmatmul.mubr.f32.gmra.mrb[0].mxu0 %v2117
    %v2230 = vpop.f32.mrb[0].mxu0
    %v2231 = vadd.f32 %v2142, %v2230
    %v2232 = vpop.f32.mrb[0].mxu0
    %2233 = vmatprep.mubr.f32.mxu0 0.0
    %2234 = vmatmul.mubr.f32.gmra.mrb[0].mxu0 %v2118
    %v2235 = vpop.f32.mrb[0].mxu0
    %v2236 = vadd.f32 %v2142, %v2235
    %v2237 = vpop.f32.mrb[0].mxu0
    %2238 = vmatprep.mubr.f32.mxu0 0.0
    %2239 = vmatmul.mubr.f32.gmra.mrb[0].mxu0 %v2119
    %v2240 = vpop.f32.mrb[0].mxu0
    %v2241 = vadd.f32 %v2142, %v2240
    %v2242 = vpop.f32.mrb[0].mxu0
    %2243 = vmatprep.mubr.f32.mxu0 0.0
    %2244 = vmatmul.mubr.f32.gmra.mrb[0].mxu0 %v2120
    %v2245 = vpop.f32.mrb[0].mxu0
    %v2246 = vadd.f32 %v2142, %v2245
    %v2247 = vpop.f32.mrb[0].mxu0
    %2248 = vdwg.mxu0
    %2249 = vst [vmem:[#allocation9] sm:$0xff] %v2211
    %2250 = vst [vmem:[#allocation9 + $0x8] sm:$0xff] %v2216
    %2251 = vst [vmem:[#allocation9 + $0x10] sm:$0xff] %v2221
    %2252 = vst [vmem:[#allocation9 + $0x18] sm:$0xff] %v2226
    %2253 = vst [vmem:[#allocation9 + $0x20] sm:$0xff] %v2231
    %2254 = vst [vmem:[#allocation9 + $0x28] sm:$0xff] %v2236
    %2255 = vst [vmem:[#allocation9 + $0x30] sm:$0xff] %v2241
    %2256 = vst [vmem:[#allocation9 + $0x38] sm:$0xff] %v2246
    // Predicated region
    $region30: #{tpu_custom_call.1} parent=1 // pred_check
      _
    $region31: #{tpu_custom_call.1} parent=1 // pred_check_branch
      %2258 = sbr.rel (0) target = $region33
    $region32: #{tpu_custom_call.1} parent=1 // pred_region
      %s2260 = ssub.s32 1024, 1024
      %2261 = vsyncadd [#allocation8], %s2260
      %s2262 = sshll.u32 [#allocation9], 4
      %s2263 = int_to_ptr.vmem [resolvable:$true] %s2262
      %2268 = dma.vmem_to_hbm [thread:$0]  %s2263, 1024, %s6, [#allocation8], 128, 128, 8
    $region33: #{tpu_custom_call.1} parent=1 // pred_fallthru
      _
    // Predicated region
    $region34: #{tpu_custom_call.1} parent=1 // pred_check
      _
    $region35: #{tpu_custom_call.1} parent=1 // pred_check_branch
      %2270 = sbr.rel (0) target = $region37
    $region36: #{tpu_custom_call.1} parent=1 // pred_region
      %2271 = dma.done [#allocation8], 1024
    $region37: #{tpu_custom_call.1} parent=1 // pred_fallthru
      _
    %2272 = vsyncpa [#allocation7], 1
    %2273 = vsyncpa [#allocation8], 1
  %2274 = vsyncmov [#allocation5]
  %s2275 = vpop.sfrf %2274
  %p2276 = scmp.eq.s32.totalorder %s2275, 0
  %p2277 = pneg %p2276
  %2279 = shalt.err (%p2277)

</llo_original>
